<compile_context>
chip_gen: v7x
topology: tpu7x:2x2x1
jax: 0.10.0
libtpu: 0.0.40
codegen_flags: <defaults>
</compile_context>

<pallas_src>
import jax
import jax.numpy as jnp
from jax import lax
from jax.experimental import pallas as pl
from jax.experimental.pallas import tpu as pltpu


def gru_recurrence_kernel(gi_ref, whh_ref, bhn_ref, hT_ref):
    """Full T-step GRU recurrence for one tile of rows.

    gi_ref  : (T, tile_m, 3H) input-gate pre-activations, gate-stacked r|z|n
              along lanes (r/z already include b_ih + b_hh; n includes b_in
              only).  Possibly bf16.
    whh_ref : (H, 3H)         W_hh^T gate-stacked, so h @ whh_ref yields all
              three hidden pre-activations in a single MXU matmul.  Possibly bf16.
    bhn_ref : (1, H)          b_hn (must stay inside the r * (.) term), f32.
    hT_ref  : (tile_m, H)     final hidden state (output), f32.
    """
    T = gi_ref.shape[0]
    tile_m, H = hT_ref.shape

    # Loop-invariant loads / broadcasts, hoisted out of the time loop.
    w_hh = whh_ref[...]                                              # (H, 3H)
    b_hn = jnp.broadcast_to(bhn_ref[...].astype(jnp.float32), (tile_m, H))
    dot_dtype = w_hh.dtype

    def sigmoid(x):
        # One EUP push (tanh) per element instead of exp + reciprocal.
        return 0.5 * jnp.tanh(0.5 * x) + 0.5

    def step(t, h):
        # Single fused hidden matmul on the serial critical path.
        gh = jnp.dot(h.astype(dot_dtype), w_hh,
                     preferred_element_type=jnp.float32)             # (m, 3H)
        g = gi_ref[t].astype(jnp.float32)                            # (m, 3H)
        rz = sigmoid(g[:, :2 * H] + gh[:, :2 * H])                   # r|z together
        r = rz[:, :H]
        z = rz[:, H:]
        n = jnp.tanh(g[:, 2 * H:] + r * (gh[:, 2 * H:] + b_hn))
        return (1.0 - z) * n + z * h

    h0 = jnp.zeros((tile_m, H), jnp.float32)
    # h stays in vregs across the in-kernel time loop; partial unroll bounds
    # code size / live ranges for long sequences.
    unroll = T if T <= 8 else 4
    hT_ref[...] = lax.fori_loop(0, T, step, h0, unroll=unroll)


def _pick_m_tile(M, T, H, gi_itemsize, *, vmem_budget_bytes=40 << 20,
                 reg_cap=256, n_cores=2):
    """Row-tile size: a multiple of 8 dividing M such that
       * tile_m <= reg_cap rows (per-step live set stays register-resident),
       * the double-buffered gi block (2 * T * 3H * tile_m * itemsize) fits a
         conservative cross-chip VMEM budget (v7x has only 64 MiB per core),
       * there are >= 2 tiles per TensorCore when possible (keeps gi prefetch
         overlapped per core while still feeding both v7x cores)."""
    bytes_per_row = 2 * T * 3 * H * gi_itemsize
    vmem_cap = max(8, vmem_budget_bytes // max(bytes_per_row, 1))
    par_cap = max(8, M // (2 * n_cores))
    cap = min(reg_cap, vmem_cap, par_cap, M)
    cand = max(8, (cap // 8) * 8)
    while cand >= 8:
        if M % cand == 0:
            return cand
        cand -= 8
    return M  # M not a multiple of 8: single full-extent tile (still legal).


def _run_recurrence(gi, w_hh_t, bhn, *, tile_m, vmem_limit_bytes, cost,
                    single_buffer_weights):
    """pallas_call over the row-parallel grid for the T-step recurrence."""
    T, M, threeH = gi.shape
    H = threeH // 3

    gi_spec = pl.BlockSpec((T, tile_m, threeH), lambda m: (0, m, 0))
    if single_buffer_weights:
        # Grid-invariant operands: no double-buffering / re-DMA needed.
        w_spec = pl.BlockSpec((H, threeH), lambda m: (0, 0),
                              pipeline_mode=pl.Buffered(1))
        b_spec = pl.BlockSpec((1, H), lambda m: (0, 0),
                              pipeline_mode=pl.Buffered(1))
    else:
        w_spec = pl.BlockSpec((H, threeH), lambda m: (0, 0))
        b_spec = pl.BlockSpec((1, H), lambda m: (0, 0))

    return pl.pallas_call(
        gru_recurrence_kernel,
        out_shape=jax.ShapeDtypeStruct((M, H), jnp.float32),
        grid_spec=pltpu.PrefetchScalarGridSpec(
            num_scalar_prefetch=0,
            grid=(M // tile_m,),
            in_specs=[gi_spec, w_spec, b_spec],
            out_specs=pl.BlockSpec((tile_m, H), lambda m: (m, 0)),
        ),
        # Rows are independent across the recurrence -> megacore-shardable.
        compiler_params=pltpu.CompilerParams(
            dimension_semantics=("parallel",),
            vmem_limit_bytes=vmem_limit_bytes),
        cost_estimate=cost,
    )(gi, w_hh_t, bhn)


def temporal_gru_pallas(x, w_ih, w_hh, b_ih, b_hh, w_proj, b_proj, out_steps,
                        use_bf16=True):
    """x: (B, T, N, H); PyTorch-shaped params:
       w_ih/w_hh: (3H, H) stacked r|z|n, b_ih/b_hh: (3H,),
       w_proj: (out_steps, H), b_proj: (out_steps,).
    Returns (B, out_steps, N, 1).  NOTE: callers should wrap the enclosing
    model in jax.jit; this function is left unjitted so the Buffered(1)
    fallback below can catch lowering errors at the pallas_call site."""
    B, T, N, H = x.shape
    M = B * N
    f32 = jnp.float32
    kdt = jnp.bfloat16 if use_bf16 else f32   # MXU-operand dtype inside kernel
    itemsize = 2 if use_bf16 else 4

    w_ih = jnp.asarray(w_ih, f32)
    w_hh = jnp.asarray(w_hh, f32)
    b_ih = jnp.asarray(b_ih, f32)
    b_hh = jnp.asarray(b_hh, f32)

    # ---- Hoisted input-gate matmul (one big MXU-friendly matmul in XLA).
    # Transpose x to time-major BEFORE the matmul (x is 3x smaller than gi) so
    # gi lands directly in the (T, M, 3H) layout the kernel consumes — no
    # post-matmul transpose, no lane-axis slicing, no extra HBM passes.
    # Fold b_ih + b_hh for the r/z gates; the n gate keeps only b_in here
    # (b_hn must remain inside the r * (W_hn h + b_hn) term).
    xm = jnp.transpose(x.astype(f32), (1, 0, 2, 3)).reshape(T * M, H)
    bias_i = jnp.concatenate([b_ih[:2 * H] + b_hh[:2 * H], b_ih[2 * H:]])
    gi = (xm @ w_ih.T + bias_i).reshape(T, M, 3 * H).astype(kdt)

    w_hh_t = w_hh.T.astype(kdt)               # (H, 3H), gate-stacked
    bhn = b_hh[2 * H:].reshape(1, H)          # stays f32

    tile_m = _pick_m_tile(M, T, H, itemsize)

    # Explicit VMEM allowance (scoped defaults are 16 MiB on v5e, 32 MiB on
    # v6e/v7x); sized from the actual working set with 2x margin, capped well
    # under v7x's 64 MiB physical per-core VMEM.
    gi_block_bytes = 2 * T * tile_m * 3 * H * itemsize          # double-buffered
    other_bytes = 2 * tile_m * H * 4 + 2 * H * 3 * H * itemsize + 4096
    vmem_limit = int(min(48 << 20,
                         max(16 << 20, 2 * (gi_block_bytes + other_bytes))))

    cost = pl.CostEstimate(
        flops=2 * 3 * T * M * H * H + 12 * T * M * H,
        transcendentals=3 * T * M * H,
        bytes_accessed=gi.size * itemsize + M * H * 4 + w_hh_t.size * itemsize,
    )

    try:
        hT = _run_recurrence(gi, w_hh_t, bhn, tile_m=tile_m,
                             vmem_limit_bytes=vmem_limit, cost=cost,
                             single_buffer_weights=True)
    except Exception:
        # pipeline_mode=pl.Buffered(1) support varies across jax versions; the
        # invariant operands are tiny, so fall back to default buffering.
        hT = _run_recurrence(gi, w_hh_t, bhn, tile_m=tile_m,
                             vmem_limit_bytes=vmem_limit, cost=cost,
                             single_buffer_weights=False)

    # ---- Final projection outside the kernel: out_steps (=4) is lane-sparse,
    # so doing it in XLA avoids masked partial stores inside the kernel.
    out = hT @ jnp.asarray(w_proj, f32).T + jnp.asarray(b_proj, f32)
    return jnp.transpose(out.reshape(B, N, out_steps), (0, 2, 1))[..., None]


def temporal_gru_ref(x, w_ih, w_hh, b_ih, b_hh, w_proj, b_proj, out_steps):
    """Pure-JAX reference matching torch.nn.GRU semantics."""
    B, T, N, H = x.shape
    M = B * N
    xm = jnp.transpose(x, (1, 0, 2, 3)).reshape(T, M, H).astype(jnp.float32)
    wih_t, whh_t = w_ih.T, w_hh.T

    def step(h, xt):
        gi = xt @ wih_t + b_ih
        gh = h @ whh_t + b_hh
        r = jax.nn.sigmoid(gi[:, :H] + gh[:, :H])
        z = jax.nn.sigmoid(gi[:, H:2 * H] + gh[:, H:2 * H])
        n = jnp.tanh(gi[:, 2 * H:] + r * gh[:, 2 * H:])
        return (1.0 - z) * n + z * h, None

    hT, _ = lax.scan(step, jnp.zeros((M, H), jnp.float32), xm)
    out = hT @ w_proj.T + b_proj
    return jnp.transpose(out.reshape(B, N, out_steps), (0, 2, 1))[..., None]


if __name__ == "__main__":
    B, T, N, H, out_steps = 2, 8, 16, 32, 4

    key = jax.random.PRNGKey(0)
    kx, k1, k2, k3, k4, k5, k6 = jax.random.split(key, 7)
    scale = 1.0 / jnp.sqrt(H)

    x = jax.random.normal(kx, (B, T, N, H), jnp.float32)
    w_ih = jax.random.uniform(k1, (3 * H, H), jnp.float32, -scale, scale)
    w_hh = jax.random.uniform(k2, (3 * H, H), jnp.float32, -scale, scale)
    b_ih = jax.random.uniform(k3, (3 * H,), jnp.float32, -scale, scale)
    b_hh = jax.random.uniform(k4, (3 * H,), jnp.float32, -scale, scale)
    w_proj = jax.random.uniform(k5, (out_steps, H), jnp.float32, -scale, scale)
    b_proj = jax.random.uniform(k6, (out_steps,), jnp.float32, -scale, scale)

    y_ref = temporal_gru_ref(x, w_ih, w_hh, b_ih, b_hh, w_proj, b_proj, out_steps)

    # f32 path: tight numerical check against the torch-semantics reference.
    y32 = temporal_gru_pallas(x, w_ih, w_hh, b_ih, b_hh, w_proj, b_proj,
                              out_steps, use_bf16=False)
    y32 = jax.block_until_ready(y32)
    assert y32.shape == (B, out_steps, N, 1), y32.shape
    err32 = float(jnp.max(jnp.abs(y32 - y_ref)))
    assert jnp.allclose(y32, y_ref, atol=1e-3, rtol=1e-3), err32

    # bf16-MXU-operand path (perf path for v6e/v7x): gate math / h carry stay
    # f32, so only a looser tolerance is needed.
    y16 = temporal_gru_pallas(x, w_ih, w_hh, b_ih, b_hh, w_proj, b_proj,
                              out_steps, use_bf16=True)
    y16 = jax.block_until_ready(y16)
    assert y16.shape == (B, out_steps, N, 1), y16.shape
    err16 = float(jnp.max(jnp.abs(y16 - y_ref)))
    assert jnp.allclose(y16, y_ref, atol=5e-2, rtol=5e-2), err16

    print("KERNEL_OK")
</pallas_src>

<mosaic_0001>
module attributes {stable_mosaic.version = 11 : i64} {
  func.func @gru_recurrence_kernel(%arg0: i32, %arg1: memref<8x8x96xf32, #tpu.memory_space<vmem>>, %arg2: memref<32x96xf32, #tpu.memory_space<vmem>>, %arg3: memref<1x32xf32, #tpu.memory_space<vmem>>, %arg4: memref<8x32xf32, #tpu.memory_space<vmem>>) attributes {dimension_semantics = [#tpu.dimension_semantics<parallel>], iteration_bounds = array<i64: 4>, scalar_prefetch = 0 : i64, scratch_operands = 0 : i64, tpu.core_type = #tpu.core_type<tc>, window_params = [{transform_indices = @transform_0, window_bounds = array<i64: 8, 8, 96>}, {pipeline_mode = #tpu.pipeline_mode<synchronous>, transform_indices = @transform_1, window_bounds = array<i64: 32, 96>}, {pipeline_mode = #tpu.pipeline_mode<synchronous>, transform_indices = @transform_2, window_bounds = array<i64: 1, 32>}, {transform_indices = @transform_3, window_bounds = array<i64: 8, 32>}]} {
    %c0 = arith.constant 0 : index
    %c0_0 = arith.constant 0 : index
    %0 = vector.load %arg2[%c0, %c0_0] : memref<32x96xf32, #tpu.memory_space<vmem>>, vector<32x96xf32>
    %c0_1 = arith.constant 0 : index
    %c0_2 = arith.constant 0 : index
    %1 = vector.load %arg3[%c0_1, %c0_2] : memref<1x32xf32, #tpu.memory_space<vmem>>, vector<1x32xf32>
    %2 = vector.shape_cast %1 : vector<1x32xf32> to vector<1x32xf32>
    %3 = vector.broadcast %2 : vector<1x32xf32> to vector<8x32xf32>
    %cst = arith.constant 0.000000e+00 : f32
    %4 = vector.broadcast %cst : f32 to vector<8x32xf32>
    %c0_i32 = arith.constant 0 : i32
    %cst_3 = arith.constant dense<0.000000e+00> : vector<8x96xf32>
    %5 = tpu.matmul %4, %0, %cst_3 {dimension_numbers = #tpu.dot_dimension_numbers<[1], [0], [0], [1], [0, 0, 1, 1], [], []>} : vector<8x32xf32>, vector<32x96xf32>, vector<8x96xf32> -> vector<8x96xf32>
    %6 = arith.index_cast %c0_i32 : i32 to index
    %c0_4 = arith.constant 0 : index
    %c0_5 = arith.constant 0 : index
    %7 = vector.load %arg1[%6, %c0_4, %c0_5] : memref<8x8x96xf32, #tpu.memory_space<vmem>>, vector<1x8x96xf32>
    %8 = vector.shape_cast %7 : vector<1x8x96xf32> to vector<8x96xf32>
    %9 = vector.extract_strided_slice %8 {offsets = [0, 0], sizes = [8, 64], strides = [1, 1]} : vector<8x96xf32> to vector<8x64xf32>
    %10 = vector.extract_strided_slice %5 {offsets = [0, 0], sizes = [8, 64], strides = [1, 1]} : vector<8x96xf32> to vector<8x64xf32>
    %11 = arith.addf %9, %10 : vector<8x64xf32>
    %cst_6 = arith.constant 5.000000e-01 : f32
    %12 = vector.broadcast %cst_6 : f32 to vector<8x64xf32>
    %13 = arith.mulf %12, %11 : vector<8x64xf32>
    %14 = math.tanh %13 : vector<8x64xf32>
    %cst_7 = arith.constant 5.000000e-01 : f32
    %15 = vector.broadcast %cst_7 : f32 to vector<8x64xf32>
    %16 = arith.mulf %15, %14 : vector<8x64xf32>
    %cst_8 = arith.constant 5.000000e-01 : f32
    %17 = vector.broadcast %cst_8 : f32 to vector<8x64xf32>
    %18 = arith.addf %16, %17 : vector<8x64xf32>
    %19 = vector.extract_strided_slice %18 {offsets = [0, 0], sizes = [8, 32], strides = [1, 1]} : vector<8x64xf32> to vector<8x32xf32>
    %20 = vector.extract_strided_slice %18 {offsets = [0, 32], sizes = [8, 32], strides = [1, 1]} : vector<8x64xf32> to vector<8x32xf32>
    %21 = vector.extract_strided_slice %8 {offsets = [0, 64], sizes = [8, 32], strides = [1, 1]} : vector<8x96xf32> to vector<8x32xf32>
    %22 = vector.extract_strided_slice %5 {offsets = [0, 64], sizes = [8, 32], strides = [1, 1]} : vector<8x96xf32> to vector<8x32xf32>
    %23 = arith.addf %22, %3 : vector<8x32xf32>
    %24 = arith.mulf %19, %23 : vector<8x32xf32>
    %25 = arith.addf %21, %24 : vector<8x32xf32>
    %26 = math.tanh %25 : vector<8x32xf32>
    %cst_9 = arith.constant 1.000000e+00 : f32
    %27 = vector.broadcast %cst_9 : f32 to vector<8x32xf32>
    %28 = arith.subf %27, %20 : vector<8x32xf32>
    %29 = arith.mulf %28, %26 : vector<8x32xf32>
    %30 = arith.mulf %20, %4 : vector<8x32xf32>
    %31 = arith.addf %29, %30 : vector<8x32xf32>
    %c1_i32 = arith.constant 1 : i32
    %cst_10 = arith.constant dense<0.000000e+00> : vector<8x96xf32>
    %32 = tpu.matmul %31, %0, %cst_10 {dimension_numbers = #tpu.dot_dimension_numbers<[1], [0], [0], [1], [0, 0, 1, 1], [], []>} : vector<8x32xf32>, vector<32x96xf32>, vector<8x96xf32> -> vector<8x96xf32>
    %33 = arith.index_cast %c1_i32 : i32 to index
    %c0_11 = arith.constant 0 : index
    %c0_12 = arith.constant 0 : index
    %34 = vector.load %arg1[%33, %c0_11, %c0_12] : memref<8x8x96xf32, #tpu.memory_space<vmem>>, vector<1x8x96xf32>
    %35 = vector.shape_cast %34 : vector<1x8x96xf32> to vector<8x96xf32>
    %36 = vector.extract_strided_slice %35 {offsets = [0, 0], sizes = [8, 64], strides = [1, 1]} : vector<8x96xf32> to vector<8x64xf32>
    %37 = vector.extract_strided_slice %32 {offsets = [0, 0], sizes = [8, 64], strides = [1, 1]} : vector<8x96xf32> to vector<8x64xf32>
    %38 = arith.addf %36, %37 : vector<8x64xf32>
    %cst_13 = arith.constant 5.000000e-01 : f32
    %39 = vector.broadcast %cst_13 : f32 to vector<8x64xf32>
    %40 = arith.mulf %39, %38 : vector<8x64xf32>
    %41 = math.tanh %40 : vector<8x64xf32>
    %cst_14 = arith.constant 5.000000e-01 : f32
    %42 = vector.broadcast %cst_14 : f32 to vector<8x64xf32>
    %43 = arith.mulf %42, %41 : vector<8x64xf32>
    %cst_15 = arith.constant 5.000000e-01 : f32
    %44 = vector.broadcast %cst_15 : f32 to vector<8x64xf32>
    %45 = arith.addf %43, %44 : vector<8x64xf32>
    %46 = vector.extract_strided_slice %45 {offsets = [0, 0], sizes = [8, 32], strides = [1, 1]} : vector<8x64xf32> to vector<8x32xf32>
    %47 = vector.extract_strided_slice %45 {offsets = [0, 32], sizes = [8, 32], strides = [1, 1]} : vector<8x64xf32> to vector<8x32xf32>
    %48 = vector.extract_strided_slice %35 {offsets = [0, 64], sizes = [8, 32], strides = [1, 1]} : vector<8x96xf32> to vector<8x32xf32>
    %49 = vector.extract_strided_slice %32 {offsets = [0, 64], sizes = [8, 32], strides = [1, 1]} : vector<8x96xf32> to vector<8x32xf32>
    %50 = arith.addf %49, %3 : vector<8x32xf32>
    %51 = arith.mulf %46, %50 : vector<8x32xf32>
    %52 = arith.addf %48, %51 : vector<8x32xf32>
    %53 = math.tanh %52 : vector<8x32xf32>
    %cst_16 = arith.constant 1.000000e+00 : f32
    %54 = vector.broadcast %cst_16 : f32 to vector<8x32xf32>
    %55 = arith.subf %54, %47 : vector<8x32xf32>
    %56 = arith.mulf %55, %53 : vector<8x32xf32>
    %57 = arith.mulf %47, %31 : vector<8x32xf32>
    %58 = arith.addf %56, %57 : vector<8x32xf32>
    %c2_i32 = arith.constant 2 : i32
    %cst_17 = arith.constant dense<0.000000e+00> : vector<8x96xf32>
    %59 = tpu.matmul %58, %0, %cst_17 {dimension_numbers = #tpu.dot_dimension_numbers<[1], [0], [0], [1], [0, 0, 1, 1], [], []>} : vector<8x32xf32>, vector<32x96xf32>, vector<8x96xf32> -> vector<8x96xf32>
    %60 = arith.index_cast %c2_i32 : i32 to index
    %c0_18 = arith.constant 0 : index
    %c0_19 = arith.constant 0 : index
    %61 = vector.load %arg1[%60, %c0_18, %c0_19] : memref<8x8x96xf32, #tpu.memory_space<vmem>>, vector<1x8x96xf32>
    %62 = vector.shape_cast %61 : vector<1x8x96xf32> to vector<8x96xf32>
    %63 = vector.extract_strided_slice %62 {offsets = [0, 0], sizes = [8, 64], strides = [1, 1]} : vector<8x96xf32> to vector<8x64xf32>
    %64 = vector.extract_strided_slice %59 {offsets = [0, 0], sizes = [8, 64], strides = [1, 1]} : vector<8x96xf32> to vector<8x64xf32>
    %65 = arith.addf %63, %64 : vector<8x64xf32>
    %cst_20 = arith.constant 5.000000e-01 : f32
    %66 = vector.broadcast %cst_20 : f32 to vector<8x64xf32>
    %67 = arith.mulf %66, %65 : vector<8x64xf32>
    %68 = math.tanh %67 : vector<8x64xf32>
    %cst_21 = arith.constant 5.000000e-01 : f32
    %69 = vector.broadcast %cst_21 : f32 to vector<8x64xf32>
    %70 = arith.mulf %69, %68 : vector<8x64xf32>
    %cst_22 = arith.constant 5.000000e-01 : f32
    %71 = vector.broadcast %cst_22 : f32 to vector<8x64xf32>
    %72 = arith.addf %70, %71 : vector<8x64xf32>
    %73 = vector.extract_strided_slice %72 {offsets = [0, 0], sizes = [8, 32], strides = [1, 1]} : vector<8x64xf32> to vector<8x32xf32>
    %74 = vector.extract_strided_slice %72 {offsets = [0, 32], sizes = [8, 32], strides = [1, 1]} : vector<8x64xf32> to vector<8x32xf32>
    %75 = vector.extract_strided_slice %62 {offsets = [0, 64], sizes = [8, 32], strides = [1, 1]} : vector<8x96xf32> to vector<8x32xf32>
    %76 = vector.extract_strided_slice %59 {offsets = [0, 64], sizes = [8, 32], strides = [1, 1]} : vector<8x96xf32> to vector<8x32xf32>
    %77 = arith.addf %76, %3 : vector<8x32xf32>
    %78 = arith.mulf %73, %77 : vector<8x32xf32>
    %79 = arith.addf %75, %78 : vector<8x32xf32>
    %80 = math.tanh %79 : vector<8x32xf32>
    %cst_23 = arith.constant 1.000000e+00 : f32
    %81 = vector.broadcast %cst_23 : f32 to vector<8x32xf32>
    %82 = arith.subf %81, %74 : vector<8x32xf32>
    %83 = arith.mulf %82, %80 : vector<8x32xf32>
    %84 = arith.mulf %74, %58 : vector<8x32xf32>
    %85 = arith.addf %83, %84 : vector<8x32xf32>
    %c3_i32 = arith.constant 3 : i32
    %cst_24 = arith.constant dense<0.000000e+00> : vector<8x96xf32>
    %86 = tpu.matmul %85, %0, %cst_24 {dimension_numbers = #tpu.dot_dimension_numbers<[1], [0], [0], [1], [0, 0, 1, 1], [], []>} : vector<8x32xf32>, vector<32x96xf32>, vector<8x96xf32> -> vector<8x96xf32>
    %87 = arith.index_cast %c3_i32 : i32 to index
    %c0_25 = arith.constant 0 : index
    %c0_26 = arith.constant 0 : index
    %88 = vector.load %arg1[%87, %c0_25, %c0_26] : memref<8x8x96xf32, #tpu.memory_space<vmem>>, vector<1x8x96xf32>
    %89 = vector.shape_cast %88 : vector<1x8x96xf32> to vector<8x96xf32>
    %90 = vector.extract_strided_slice %89 {offsets = [0, 0], sizes = [8, 64], strides = [1, 1]} : vector<8x96xf32> to vector<8x64xf32>
    %91 = vector.extract_strided_slice %86 {offsets = [0, 0], sizes = [8, 64], strides = [1, 1]} : vector<8x96xf32> to vector<8x64xf32>
    %92 = arith.addf %90, %91 : vector<8x64xf32>
    %cst_27 = arith.constant 5.000000e-01 : f32
    %93 = vector.broadcast %cst_27 : f32 to vector<8x64xf32>
    %94 = arith.mulf %93, %92 : vector<8x64xf32>
    %95 = math.tanh %94 : vector<8x64xf32>
    %cst_28 = arith.constant 5.000000e-01 : f32
    %96 = vector.broadcast %cst_28 : f32 to vector<8x64xf32>
    %97 = arith.mulf %96, %95 : vector<8x64xf32>
    %cst_29 = arith.constant 5.000000e-01 : f32
    %98 = vector.broadcast %cst_29 : f32 to vector<8x64xf32>
    %99 = arith.addf %97, %98 : vector<8x64xf32>
    %100 = vector.extract_strided_slice %99 {offsets = [0, 0], sizes = [8, 32], strides = [1, 1]} : vector<8x64xf32> to vector<8x32xf32>
    %101 = vector.extract_strided_slice %99 {offsets = [0, 32], sizes = [8, 32], strides = [1, 1]} : vector<8x64xf32> to vector<8x32xf32>
    %102 = vector.extract_strided_slice %89 {offsets = [0, 64], sizes = [8, 32], strides = [1, 1]} : vector<8x96xf32> to vector<8x32xf32>
    %103 = vector.extract_strided_slice %86 {offsets = [0, 64], sizes = [8, 32], strides = [1, 1]} : vector<8x96xf32> to vector<8x32xf32>
    %104 = arith.addf %103, %3 : vector<8x32xf32>
    %105 = arith.mulf %100, %104 : vector<8x32xf32>
    %106 = arith.addf %102, %105 : vector<8x32xf32>
    %107 = math.tanh %106 : vector<8x32xf32>
    %cst_30 = arith.constant 1.000000e+00 : f32
    %108 = vector.broadcast %cst_30 : f32 to vector<8x32xf32>
    %109 = arith.subf %108, %101 : vector<8x32xf32>
    %110 = arith.mulf %109, %107 : vector<8x32xf32>
    %111 = arith.mulf %101, %85 : vector<8x32xf32>
    %112 = arith.addf %110, %111 : vector<8x32xf32>
    %c4_i32 = arith.constant 4 : i32
    %cst_31 = arith.constant dense<0.000000e+00> : vector<8x96xf32>
    %113 = tpu.matmul %112, %0, %cst_31 {dimension_numbers = #tpu.dot_dimension_numbers<[1], [0], [0], [1], [0, 0, 1, 1], [], []>} : vector<8x32xf32>, vector<32x96xf32>, vector<8x96xf32> -> vector<8x96xf32>
    %114 = arith.index_cast %c4_i32 : i32 to index
    %c0_32 = arith.constant 0 : index
    %c0_33 = arith.constant 0 : index
    %115 = vector.load %arg1[%114, %c0_32, %c0_33] : memref<8x8x96xf32, #tpu.memory_space<vmem>>, vector<1x8x96xf32>
    %116 = vector.shape_cast %115 : vector<1x8x96xf32> to vector<8x96xf32>
    %117 = vector.extract_strided_slice %116 {offsets = [0, 0], sizes = [8, 64], strides = [1, 1]} : vector<8x96xf32> to vector<8x64xf32>
    %118 = vector.extract_strided_slice %113 {offsets = [0, 0], sizes = [8, 64], strides = [1, 1]} : vector<8x96xf32> to vector<8x64xf32>
    %119 = arith.addf %117, %118 : vector<8x64xf32>
    %cst_34 = arith.constant 5.000000e-01 : f32
    %120 = vector.broadcast %cst_34 : f32 to vector<8x64xf32>
    %121 = arith.mulf %120, %119 : vector<8x64xf32>
    %122 = math.tanh %121 : vector<8x64xf32>
    %cst_35 = arith.constant 5.000000e-01 : f32
    %123 = vector.broadcast %cst_35 : f32 to vector<8x64xf32>
    %124 = arith.mulf %123, %122 : vector<8x64xf32>
    %cst_36 = arith.constant 5.000000e-01 : f32
    %125 = vector.broadcast %cst_36 : f32 to vector<8x64xf32>
    %126 = arith.addf %124, %125 : vector<8x64xf32>
    %127 = vector.extract_strided_slice %126 {offsets = [0, 0], sizes = [8, 32], strides = [1, 1]} : vector<8x64xf32> to vector<8x32xf32>
    %128 = vector.extract_strided_slice %126 {offsets = [0, 32], sizes = [8, 32], strides = [1, 1]} : vector<8x64xf32> to vector<8x32xf32>
    %129 = vector.extract_strided_slice %116 {offsets = [0, 64], sizes = [8, 32], strides = [1, 1]} : vector<8x96xf32> to vector<8x32xf32>
    %130 = vector.extract_strided_slice %113 {offsets = [0, 64], sizes = [8, 32], strides = [1, 1]} : vector<8x96xf32> to vector<8x32xf32>
    %131 = arith.addf %130, %3 : vector<8x32xf32>
    %132 = arith.mulf %127, %131 : vector<8x32xf32>
    %133 = arith.addf %129, %132 : vector<8x32xf32>
    %134 = math.tanh %133 : vector<8x32xf32>
    %cst_37 = arith.constant 1.000000e+00 : f32
    %135 = vector.broadcast %cst_37 : f32 to vector<8x32xf32>
    %136 = arith.subf %135, %128 : vector<8x32xf32>
    %137 = arith.mulf %136, %134 : vector<8x32xf32>
    %138 = arith.mulf %128, %112 : vector<8x32xf32>
    %139 = arith.addf %137, %138 : vector<8x32xf32>
    %c5_i32 = arith.constant 5 : i32
    %cst_38 = arith.constant dense<0.000000e+00> : vector<8x96xf32>
    %140 = tpu.matmul %139, %0, %cst_38 {dimension_numbers = #tpu.dot_dimension_numbers<[1], [0], [0], [1], [0, 0, 1, 1], [], []>} : vector<8x32xf32>, vector<32x96xf32>, vector<8x96xf32> -> vector<8x96xf32>
    %141 = arith.index_cast %c5_i32 : i32 to index
    %c0_39 = arith.constant 0 : index
    %c0_40 = arith.constant 0 : index
    %142 = vector.load %arg1[%141, %c0_39, %c0_40] : memref<8x8x96xf32, #tpu.memory_space<vmem>>, vector<1x8x96xf32>
    %143 = vector.shape_cast %142 : vector<1x8x96xf32> to vector<8x96xf32>
    %144 = vector.extract_strided_slice %143 {offsets = [0, 0], sizes = [8, 64], strides = [1, 1]} : vector<8x96xf32> to vector<8x64xf32>
    %145 = vector.extract_strided_slice %140 {offsets = [0, 0], sizes = [8, 64], strides = [1, 1]} : vector<8x96xf32> to vector<8x64xf32>
    %146 = arith.addf %144, %145 : vector<8x64xf32>
    %cst_41 = arith.constant 5.000000e-01 : f32
    %147 = vector.broadcast %cst_41 : f32 to vector<8x64xf32>
    %148 = arith.mulf %147, %146 : vector<8x64xf32>
    %149 = math.tanh %148 : vector<8x64xf32>
    %cst_42 = arith.constant 5.000000e-01 : f32
    %150 = vector.broadcast %cst_42 : f32 to vector<8x64xf32>
    %151 = arith.mulf %150, %149 : vector<8x64xf32>
    %cst_43 = arith.constant 5.000000e-01 : f32
    %152 = vector.broadcast %cst_43 : f32 to vector<8x64xf32>
    %153 = arith.addf %151, %152 : vector<8x64xf32>
    %154 = vector.extract_strided_slice %153 {offsets = [0, 0], sizes = [8, 32], strides = [1, 1]} : vector<8x64xf32> to vector<8x32xf32>
    %155 = vector.extract_strided_slice %153 {offsets = [0, 32], sizes = [8, 32], strides = [1, 1]} : vector<8x64xf32> to vector<8x32xf32>
    %156 = vector.extract_strided_slice %143 {offsets = [0, 64], sizes = [8, 32], strides = [1, 1]} : vector<8x96xf32> to vector<8x32xf32>
    %157 = vector.extract_strided_slice %140 {offsets = [0, 64], sizes = [8, 32], strides = [1, 1]} : vector<8x96xf32> to vector<8x32xf32>
    %158 = arith.addf %157, %3 : vector<8x32xf32>
    %159 = arith.mulf %154, %158 : vector<8x32xf32>
    %160 = arith.addf %156, %159 : vector<8x32xf32>
    %161 = math.tanh %160 : vector<8x32xf32>
    %cst_44 = arith.constant 1.000000e+00 : f32
    %162 = vector.broadcast %cst_44 : f32 to vector<8x32xf32>
    %163 = arith.subf %162, %155 : vector<8x32xf32>
    %164 = arith.mulf %163, %161 : vector<8x32xf32>
    %165 = arith.mulf %155, %139 : vector<8x32xf32>
    %166 = arith.addf %164, %165 : vector<8x32xf32>
    %c6_i32 = arith.constant 6 : i32
    %cst_45 = arith.constant dense<0.000000e+00> : vector<8x96xf32>
    %167 = tpu.matmul %166, %0, %cst_45 {dimension_numbers = #tpu.dot_dimension_numbers<[1], [0], [0], [1], [0, 0, 1, 1], [], []>} : vector<8x32xf32>, vector<32x96xf32>, vector<8x96xf32> -> vector<8x96xf32>
    %168 = arith.index_cast %c6_i32 : i32 to index
    %c0_46 = arith.constant 0 : index
    %c0_47 = arith.constant 0 : index
    %169 = vector.load %arg1[%168, %c0_46, %c0_47] : memref<8x8x96xf32, #tpu.memory_space<vmem>>, vector<1x8x96xf32>
    %170 = vector.shape_cast %169 : vector<1x8x96xf32> to vector<8x96xf32>
    %171 = vector.extract_strided_slice %170 {offsets = [0, 0], sizes = [8, 64], strides = [1, 1]} : vector<8x96xf32> to vector<8x64xf32>
    %172 = vector.extract_strided_slice %167 {offsets = [0, 0], sizes = [8, 64], strides = [1, 1]} : vector<8x96xf32> to vector<8x64xf32>
    %173 = arith.addf %171, %172 : vector<8x64xf32>
    %cst_48 = arith.constant 5.000000e-01 : f32
    %174 = vector.broadcast %cst_48 : f32 to vector<8x64xf32>
    %175 = arith.mulf %174, %173 : vector<8x64xf32>
    %176 = math.tanh %175 : vector<8x64xf32>
    %cst_49 = arith.constant 5.000000e-01 : f32
    %177 = vector.broadcast %cst_49 : f32 to vector<8x64xf32>
    %178 = arith.mulf %177, %176 : vector<8x64xf32>
    %cst_50 = arith.constant 5.000000e-01 : f32
    %179 = vector.broadcast %cst_50 : f32 to vector<8x64xf32>
    %180 = arith.addf %178, %179 : vector<8x64xf32>
    %181 = vector.extract_strided_slice %180 {offsets = [0, 0], sizes = [8, 32], strides = [1, 1]} : vector<8x64xf32> to vector<8x32xf32>
    %182 = vector.extract_strided_slice %180 {offsets = [0, 32], sizes = [8, 32], strides = [1, 1]} : vector<8x64xf32> to vector<8x32xf32>
    %183 = vector.extract_strided_slice %170 {offsets = [0, 64], sizes = [8, 32], strides = [1, 1]} : vector<8x96xf32> to vector<8x32xf32>
    %184 = vector.extract_strided_slice %167 {offsets = [0, 64], sizes = [8, 32], strides = [1, 1]} : vector<8x96xf32> to vector<8x32xf32>
    %185 = arith.addf %184, %3 : vector<8x32xf32>
    %186 = arith.mulf %181, %185 : vector<8x32xf32>
    %187 = arith.addf %183, %186 : vector<8x32xf32>
    %188 = math.tanh %187 : vector<8x32xf32>
    %cst_51 = arith.constant 1.000000e+00 : f32
    %189 = vector.broadcast %cst_51 : f32 to vector<8x32xf32>
    %190 = arith.subf %189, %182 : vector<8x32xf32>
    %191 = arith.mulf %190, %188 : vector<8x32xf32>
    %192 = arith.mulf %182, %166 : vector<8x32xf32>
    %193 = arith.addf %191, %192 : vector<8x32xf32>
    %c7_i32 = arith.constant 7 : i32
    %cst_52 = arith.constant dense<0.000000e+00> : vector<8x96xf32>
    %194 = tpu.matmul %193, %0, %cst_52 {dimension_numbers = #tpu.dot_dimension_numbers<[1], [0], [0], [1], [0, 0, 1, 1], [], []>} : vector<8x32xf32>, vector<32x96xf32>, vector<8x96xf32> -> vector<8x96xf32>
    %195 = arith.index_cast %c7_i32 : i32 to index
    %c0_53 = arith.constant 0 : index
    %c0_54 = arith.constant 0 : index
    %196 = vector.load %arg1[%195, %c0_53, %c0_54] : memref<8x8x96xf32, #tpu.memory_space<vmem>>, vector<1x8x96xf32>
    %197 = vector.shape_cast %196 : vector<1x8x96xf32> to vector<8x96xf32>
    %198 = vector.extract_strided_slice %197 {offsets = [0, 0], sizes = [8, 64], strides = [1, 1]} : vector<8x96xf32> to vector<8x64xf32>
    %199 = vector.extract_strided_slice %194 {offsets = [0, 0], sizes = [8, 64], strides = [1, 1]} : vector<8x96xf32> to vector<8x64xf32>
    %200 = arith.addf %198, %199 : vector<8x64xf32>
    %cst_55 = arith.constant 5.000000e-01 : f32
    %201 = vector.broadcast %cst_55 : f32 to vector<8x64xf32>
    %202 = arith.mulf %201, %200 : vector<8x64xf32>
    %203 = math.tanh %202 : vector<8x64xf32>
    %cst_56 = arith.constant 5.000000e-01 : f32
    %204 = vector.broadcast %cst_56 : f32 to vector<8x64xf32>
    %205 = arith.mulf %204, %203 : vector<8x64xf32>
    %cst_57 = arith.constant 5.000000e-01 : f32
    %206 = vector.broadcast %cst_57 : f32 to vector<8x64xf32>
    %207 = arith.addf %205, %206 : vector<8x64xf32>
    %208 = vector.extract_strided_slice %207 {offsets = [0, 0], sizes = [8, 32], strides = [1, 1]} : vector<8x64xf32> to vector<8x32xf32>
    %209 = vector.extract_strided_slice %207 {offsets = [0, 32], sizes = [8, 32], strides = [1, 1]} : vector<8x64xf32> to vector<8x32xf32>
    %210 = vector.extract_strided_slice %197 {offsets = [0, 64], sizes = [8, 32], strides = [1, 1]} : vector<8x96xf32> to vector<8x32xf32>
    %211 = vector.extract_strided_slice %194 {offsets = [0, 64], sizes = [8, 32], strides = [1, 1]} : vector<8x96xf32> to vector<8x32xf32>
    %212 = arith.addf %211, %3 : vector<8x32xf32>
    %213 = arith.mulf %208, %212 : vector<8x32xf32>
    %214 = arith.addf %210, %213 : vector<8x32xf32>
    %215 = math.tanh %214 : vector<8x32xf32>
    %cst_58 = arith.constant 1.000000e+00 : f32
    %216 = vector.broadcast %cst_58 : f32 to vector<8x32xf32>
    %217 = arith.subf %216, %209 : vector<8x32xf32>
    %218 = arith.mulf %217, %215 : vector<8x32xf32>
    %219 = arith.mulf %209, %193 : vector<8x32xf32>
    %220 = arith.addf %218, %219 : vector<8x32xf32>
    %c8_i32 = arith.constant 8 : i32
    %c0_59 = arith.constant 0 : index
    %c0_60 = arith.constant 0 : index
    %221 = vector.load %arg4[%c0_59, %c0_60] : memref<8x32xf32, #tpu.memory_space<vmem>>, vector<8x32xf32>
    tpu.vector_store %arg4[%c0_59, %c0_60], %220 {strides = array<i32>} : memref<8x32xf32, #tpu.memory_space<vmem>>, vector<8x32xf32>,
    return
  }
  func.func @transform_0(%arg0: i32) -> (i32, i32, i32) {
    %c0_i32 = arith.constant 0 : i32
    %c0_i32_0 = arith.constant 0 : i32
    %c0_i32_1 = arith.constant 0 : i32
    return %c0_i32, %arg0, %c0_i32_0 : i32, i32, i32
  }
  func.func @transform_1(%arg0: i32) -> (i32, i32) {
    %c0_i32 = arith.constant 0 : i32
    %c0_i32_0 = arith.constant 0 : i32
    %c0_i32_1 = arith.constant 0 : i32
    return %c0_i32, %c0_i32_0 : i32, i32
  }
  func.func @transform_2(%arg0: i32) -> (i32, i32) {
    %c0_i32 = arith.constant 0 : i32
    %c0_i32_0 = arith.constant 0 : i32
    %c0_i32_1 = arith.constant 0 : i32
    return %c0_i32, %c0_i32_0 : i32, i32
  }
  func.func @transform_3(%arg0: i32) -> (i32, i32) {
    %c0_i32 = arith.constant 0 : i32
    %c0_i32_0 = arith.constant 0 : i32
    return %arg0, %c0_i32 : i32, i32
  }
}

module attributes {stable_mosaic.version = 11 : i64} {
  func.func @gru_recurrence_kernel(%arg0: i32, %arg1: memref<8x8x96xf32, #tpu.memory_space<vmem>>, %arg2: memref<32x96xf32, #tpu.memory_space<vmem>>, %arg3: memref<1x32xf32, #tpu.memory_space<vmem>>, %arg4: memref<8x32xf32, #tpu.memory_space<vmem>>) attributes {dimension_semantics = [#tpu.dimension_semantics<parallel>], iteration_bounds = array<i64: 4>, scalar_prefetch = 0 : i64, scratch_operands = 0 : i64, tpu.core_type = #tpu.core_type<tc>, window_params = [{transform_indices = @transform_0, window_bounds = array<i64: 8, 8, 96>}, {pipeline_mode = #tpu.pipeline_mode<synchronous>, transform_indices = @transform_1, window_bounds = array<i64: 32, 96>}, {pipeline_mode = #tpu.pipeline_mode<synchronous>, transform_indices = @transform_2, window_bounds = array<i64: 1, 32>}, {transform_indices = @transform_3, window_bounds = array<i64: 8, 32>}]} {
    %c0 = arith.constant 0 : index
    %c0_0 = arith.constant 0 : index
    %0 = vector.load %arg2[%c0, %c0_0] : memref<32x96xf32, #tpu.memory_space<vmem>>, vector<32x96xf32>
    %c0_1 = arith.constant 0 : index
    %c0_2 = arith.constant 0 : index
    %1 = vector.load %arg3[%c0_1, %c0_2] : memref<1x32xf32, #tpu.memory_space<vmem>>, vector<1x32xf32>
    %2 = vector.shape_cast %1 : vector<1x32xf32> to vector<1x32xf32>
    %3 = vector.broadcast %2 : vector<1x32xf32> to vector<8x32xf32>
    %cst = arith.constant 0.000000e+00 : f32
    %4 = vector.broadcast %cst : f32 to vector<8x32xf32>
    %c0_i32 = arith.constant 0 : i32
    %cst_3 = arith.constant dense<0.000000e+00> : vector<8x96xf32>
    %5 = tpu.matmul %4, %0, %cst_3 {dimension_numbers = #tpu.dot_dimension_numbers<[1], [0], [0], [1], [0, 0, 1, 1], [], []>} : vector<8x32xf32>, vector<32x96xf32>, vector<8x96xf32> -> vector<8x96xf32>
    %6 = arith.index_cast %c0_i32 : i32 to index
    %c0_4 = arith.constant 0 : index
    %c0_5 = arith.constant 0 : index
    %7 = vector.load %arg1[%6, %c0_4, %c0_5] : memref<8x8x96xf32, #tpu.memory_space<vmem>>, vector<1x8x96xf32>
    %8 = vector.shape_cast %7 : vector<1x8x96xf32> to vector<8x96xf32>
    %9 = vector.extract_strided_slice %8 {offsets = [0, 0], sizes = [8, 64], strides = [1, 1]} : vector<8x96xf32> to vector<8x64xf32>
    %10 = vector.extract_strided_slice %5 {offsets = [0, 0], sizes = [8, 64], strides = [1, 1]} : vector<8x96xf32> to vector<8x64xf32>
    %11 = arith.addf %9, %10 : vector<8x64xf32>
    %cst_6 = arith.constant 5.000000e-01 : f32
    %12 = vector.broadcast %cst_6 : f32 to vector<8x64xf32>
    %13 = arith.mulf %12, %11 : vector<8x64xf32>
    %14 = math.tanh %13 : vector<8x64xf32>
    %cst_7 = arith.constant 5.000000e-01 : f32
    %15 = vector.broadcast %cst_7 : f32 to vector<8x64xf32>
    %16 = arith.mulf %15, %14 : vector<8x64xf32>
    %cst_8 = arith.constant 5.000000e-01 : f32
    %17 = vector.broadcast %cst_8 : f32 to vector<8x64xf32>
    %18 = arith.addf %16, %17 : vector<8x64xf32>
    %19 = vector.extract_strided_slice %18 {offsets = [0, 0], sizes = [8, 32], strides = [1, 1]} : vector<8x64xf32> to vector<8x32xf32>
    %20 = vector.extract_strided_slice %18 {offsets = [0, 32], sizes = [8, 32], strides = [1, 1]} : vector<8x64xf32> to vector<8x32xf32>
    %21 = vector.extract_strided_slice %8 {offsets = [0, 64], sizes = [8, 32], strides = [1, 1]} : vector<8x96xf32> to vector<8x32xf32>
    %22 = vector.extract_strided_slice %5 {offsets = [0, 64], sizes = [8, 32], strides = [1, 1]} : vector<8x96xf32> to vector<8x32xf32>
    %23 = arith.addf %22, %3 : vector<8x32xf32>
    %24 = arith.mulf %19, %23 : vector<8x32xf32>
    %25 = arith.addf %21, %24 : vector<8x32xf32>
    %26 = math.tanh %25 : vector<8x32xf32>
    %cst_9 = arith.constant 1.000000e+00 : f32
    %27 = vector.broadcast %cst_9 : f32 to vector<8x32xf32>
    %28 = arith.subf %27, %20 : vector<8x32xf32>
    %29 = arith.mulf %28, %26 : vector<8x32xf32>
    %30 = arith.mulf %20, %4 : vector<8x32xf32>
    %31 = arith.addf %29, %30 : vector<8x32xf32>
    %c1_i32 = arith.constant 1 : i32
    %cst_10 = arith.constant dense<0.000000e+00> : vector<8x96xf32>
    %32 = tpu.matmul %31, %0, %cst_10 {dimension_numbers = #tpu.dot_dimension_numbers<[1], [0], [0], [1], [0, 0, 1, 1], [], []>} : vector<8x32xf32>, vector<32x96xf32>, vector<8x96xf32> -> vector<8x96xf32>
    %33 = arith.index_cast %c1_i32 : i32 to index
    %c0_11 = arith.constant 0 : index
    %c0_12 = arith.constant 0 : index
    %34 = vector.load %arg1[%33, %c0_11, %c0_12] : memref<8x8x96xf32, #tpu.memory_space<vmem>>, vector<1x8x96xf32>
    %35 = vector.shape_cast %34 : vector<1x8x96xf32> to vector<8x96xf32>
    %36 = vector.extract_strided_slice %35 {offsets = [0, 0], sizes = [8, 64], strides = [1, 1]} : vector<8x96xf32> to vector<8x64xf32>
    %37 = vector.extract_strided_slice %32 {offsets = [0, 0], sizes = [8, 64], strides = [1, 1]} : vector<8x96xf32> to vector<8x64xf32>
    %38 = arith.addf %36, %37 : vector<8x64xf32>
    %cst_13 = arith.constant 5.000000e-01 : f32
    %39 = vector.broadcast %cst_13 : f32 to vector<8x64xf32>
    %40 = arith.mulf %39, %38 : vector<8x64xf32>
    %41 = math.tanh %40 : vector<8x64xf32>
    %cst_14 = arith.constant 5.000000e-01 : f32
    %42 = vector.broadcast %cst_14 : f32 to vector<8x64xf32>
    %43 = arith.mulf %42, %41 : vector<8x64xf32>
    %cst_15 = arith.constant 5.000000e-01 : f32
    %44 = vector.broadcast %cst_15 : f32 to vector<8x64xf32>
    %45 = arith.addf %43, %44 : vector<8x64xf32>
    %46 = vector.extract_strided_slice %45 {offsets = [0, 0], sizes = [8, 32], strides = [1, 1]} : vector<8x64xf32> to vector<8x32xf32>
    %47 = vector.extract_strided_slice %45 {offsets = [0, 32], sizes = [8, 32], strides = [1, 1]} : vector<8x64xf32> to vector<8x32xf32>
    %48 = vector.extract_strided_slice %35 {offsets = [0, 64], sizes = [8, 32], strides = [1, 1]} : vector<8x96xf32> to vector<8x32xf32>
    %49 = vector.extract_strided_slice %32 {offsets = [0, 64], sizes = [8, 32], strides = [1, 1]} : vector<8x96xf32> to vector<8x32xf32>
    %50 = arith.addf %49, %3 : vector<8x32xf32>
    %51 = arith.mulf %46, %50 : vector<8x32xf32>
    %52 = arith.addf %48, %51 : vector<8x32xf32>
    %53 = math.tanh %52 : vector<8x32xf32>
    %cst_16 = arith.constant 1.000000e+00 : f32
    %54 = vector.broadcast %cst_16 : f32 to vector<8x32xf32>
    %55 = arith.subf %54, %47 : vector<8x32xf32>
    %56 = arith.mulf %55, %53 : vector<8x32xf32>
    %57 = arith.mulf %47, %31 : vector<8x32xf32>
    %58 = arith.addf %56, %57 : vector<8x32xf32>
    %c2_i32 = arith.constant 2 : i32
    %cst_17 = arith.constant dense<0.000000e+00> : vector<8x96xf32>
    %59 = tpu.matmul %58, %0, %cst_17 {dimension_numbers = #tpu.dot_dimension_numbers<[1], [0], [0], [1], [0, 0, 1, 1], [], []>} : vector<8x32xf32>, vector<32x96xf32>, vector<8x96xf32> -> vector<8x96xf32>
    %60 = arith.index_cast %c2_i32 : i32 to index
    %c0_18 = arith.constant 0 : index
    %c0_19 = arith.constant 0 : index
    %61 = vector.load %arg1[%60, %c0_18, %c0_19] : memref<8x8x96xf32, #tpu.memory_space<vmem>>, vector<1x8x96xf32>
    %62 = vector.shape_cast %61 : vector<1x8x96xf32> to vector<8x96xf32>
    %63 = vector.extract_strided_slice %62 {offsets = [0, 0], sizes = [8, 64], strides = [1, 1]} : vector<8x96xf32> to vector<8x64xf32>
    %64 = vector.extract_strided_slice %59 {offsets = [0, 0], sizes = [8, 64], strides = [1, 1]} : vector<8x96xf32> to vector<8x64xf32>
    %65 = arith.addf %63, %64 : vector<8x64xf32>
    %cst_20 = arith.constant 5.000000e-01 : f32
    %66 = vector.broadcast %cst_20 : f32 to vector<8x64xf32>
    %67 = arith.mulf %66, %65 : vector<8x64xf32>
    %68 = math.tanh %67 : vector<8x64xf32>
    %cst_21 = arith.constant 5.000000e-01 : f32
    %69 = vector.broadcast %cst_21 : f32 to vector<8x64xf32>
    %70 = arith.mulf %69, %68 : vector<8x64xf32>
    %cst_22 = arith.constant 5.000000e-01 : f32
    %71 = vector.broadcast %cst_22 : f32 to vector<8x64xf32>
    %72 = arith.addf %70, %71 : vector<8x64xf32>
    %73 = vector.extract_strided_slice %72 {offsets = [0, 0], sizes = [8, 32], strides = [1, 1]} : vector<8x64xf32> to vector<8x32xf32>
    %74 = vector.extract_strided_slice %72 {offsets = [0, 32], sizes = [8, 32], strides = [1, 1]} : vector<8x64xf32> to vector<8x32xf32>
    %75 = vector.extract_strided_slice %62 {offsets = [0, 64], sizes = [8, 32], strides = [1, 1]} : vector<8x96xf32> to vector<8x32xf32>
    %76 = vector.extract_strided_slice %59 {offsets = [0, 64], sizes = [8, 32], strides = [1, 1]} : vector<8x96xf32> to vector<8x32xf32>
    %77 = arith.addf %76, %3 : vector<8x32xf32>
    %78 = arith.mulf %73, %77 : vector<8x32xf32>
    %79 = arith.addf %75, %78 : vector<8x32xf32>
    %80 = math.tanh %79 : vector<8x32xf32>
    %cst_23 = arith.constant 1.000000e+00 : f32
    %81 = vector.broadcast %cst_23 : f32 to vector<8x32xf32>
    %82 = arith.subf %81, %74 : vector<8x32xf32>
    %83 = arith.mulf %82, %80 : vector<8x32xf32>
    %84 = arith.mulf %74, %58 : vector<8x32xf32>
    %85 = arith.addf %83, %84 : vector<8x32xf32>
    %c3_i32 = arith.constant 3 : i32
    %cst_24 = arith.constant dense<0.000000e+00> : vector<8x96xf32>
    %86 = tpu.matmul %85, %0, %cst_24 {dimension_numbers = #tpu.dot_dimension_numbers<[1], [0], [0], [1], [0, 0, 1, 1], [], []>} : vector<8x32xf32>, vector<32x96xf32>, vector<8x96xf32> -> vector<8x96xf32>
    %87 = arith.index_cast %c3_i32 : i32 to index
    %c0_25 = arith.constant 0 : index
    %c0_26 = arith.constant 0 : index
    %88 = vector.load %arg1[%87, %c0_25, %c0_26] : memref<8x8x96xf32, #tpu.memory_space<vmem>>, vector<1x8x96xf32>
    %89 = vector.shape_cast %88 : vector<1x8x96xf32> to vector<8x96xf32>
    %90 = vector.extract_strided_slice %89 {offsets = [0, 0], sizes = [8, 64], strides = [1, 1]} : vector<8x96xf32> to vector<8x64xf32>
    %91 = vector.extract_strided_slice %86 {offsets = [0, 0], sizes = [8, 64], strides = [1, 1]} : vector<8x96xf32> to vector<8x64xf32>
    %92 = arith.addf %90, %91 : vector<8x64xf32>
    %cst_27 = arith.constant 5.000000e-01 : f32
    %93 = vector.broadcast %cst_27 : f32 to vector<8x64xf32>
    %94 = arith.mulf %93, %92 : vector<8x64xf32>
    %95 = math.tanh %94 : vector<8x64xf32>
    %cst_28 = arith.constant 5.000000e-01 : f32
    %96 = vector.broadcast %cst_28 : f32 to vector<8x64xf32>
    %97 = arith.mulf %96, %95 : vector<8x64xf32>
    %cst_29 = arith.constant 5.000000e-01 : f32
    %98 = vector.broadcast %cst_29 : f32 to vector<8x64xf32>
    %99 = arith.addf %97, %98 : vector<8x64xf32>
    %100 = vector.extract_strided_slice %99 {offsets = [0, 0], sizes = [8, 32], strides = [1, 1]} : vector<8x64xf32> to vector<8x32xf32>
    %101 = vector.extract_strided_slice %99 {offsets = [0, 32], sizes = [8, 32], strides = [1, 1]} : vector<8x64xf32> to vector<8x32xf32>
    %102 = vector.extract_strided_slice %89 {offsets = [0, 64], sizes = [8, 32], strides = [1, 1]} : vector<8x96xf32> to vector<8x32xf32>
    %103 = vector.extract_strided_slice %86 {offsets = [0, 64], sizes = [8, 32], strides = [1, 1]} : vector<8x96xf32> to vector<8x32xf32>
    %104 = arith.addf %103, %3 : vector<8x32xf32>
    %105 = arith.mulf %100, %104 : vector<8x32xf32>
    %106 = arith.addf %102, %105 : vector<8x32xf32>
    %107 = math.tanh %106 : vector<8x32xf32>
    %cst_30 = arith.constant 1.000000e+00 : f32
    %108 = vector.broadcast %cst_30 : f32 to vector<8x32xf32>
    %109 = arith.subf %108, %101 : vector<8x32xf32>
    %110 = arith.mulf %109, %107 : vector<8x32xf32>
    %111 = arith.mulf %101, %85 : vector<8x32xf32>
    %112 = arith.addf %110, %111 : vector<8x32xf32>
    %c4_i32 = arith.constant 4 : i32
    %cst_31 = arith.constant dense<0.000000e+00> : vector<8x96xf32>
    %113 = tpu.matmul %112, %0, %cst_31 {dimension_numbers = #tpu.dot_dimension_numbers<[1], [0], [0], [1], [0, 0, 1, 1], [], []>} : vector<8x32xf32>, vector<32x96xf32>, vector<8x96xf32> -> vector<8x96xf32>
    %114 = arith.index_cast %c4_i32 : i32 to index
    %c0_32 = arith.constant 0 : index
    %c0_33 = arith.constant 0 : index
    %115 = vector.load %arg1[%114, %c0_32, %c0_33] : memref<8x8x96xf32, #tpu.memory_space<vmem>>, vector<1x8x96xf32>
    %116 = vector.shape_cast %115 : vector<1x8x96xf32> to vector<8x96xf32>
    %117 = vector.extract_strided_slice %116 {offsets = [0, 0], sizes = [8, 64], strides = [1, 1]} : vector<8x96xf32> to vector<8x64xf32>
    %118 = vector.extract_strided_slice %113 {offsets = [0, 0], sizes = [8, 64], strides = [1, 1]} : vector<8x96xf32> to vector<8x64xf32>
    %119 = arith.addf %117, %118 : vector<8x64xf32>
    %cst_34 = arith.constant 5.000000e-01 : f32
    %120 = vector.broadcast %cst_34 : f32 to vector<8x64xf32>
    %121 = arith.mulf %120, %119 : vector<8x64xf32>
    %122 = math.tanh %121 : vector<8x64xf32>
    %cst_35 = arith.constant 5.000000e-01 : f32
    %123 = vector.broadcast %cst_35 : f32 to vector<8x64xf32>
    %124 = arith.mulf %123, %122 : vector<8x64xf32>
    %cst_36 = arith.constant 5.000000e-01 : f32
    %125 = vector.broadcast %cst_36 : f32 to vector<8x64xf32>
    %126 = arith.addf %124, %125 : vector<8x64xf32>
    %127 = vector.extract_strided_slice %126 {offsets = [0, 0], sizes = [8, 32], strides = [1, 1]} : vector<8x64xf32> to vector<8x32xf32>
    %128 = vector.extract_strided_slice %126 {offsets = [0, 32], sizes = [8, 32], strides = [1, 1]} : vector<8x64xf32> to vector<8x32xf32>
    %129 = vector.extract_strided_slice %116 {offsets = [0, 64], sizes = [8, 32], strides = [1, 1]} : vector<8x96xf32> to vector<8x32xf32>
    %130 = vector.extract_strided_slice %113 {offsets = [0, 64], sizes = [8, 32], strides = [1, 1]} : vector<8x96xf32> to vector<8x32xf32>
    %131 = arith.addf %130, %3 : vector<8x32xf32>
    %132 = arith.mulf %127, %131 : vector<8x32xf32>
    %133 = arith.addf %129, %132 : vector<8x32xf32>
    %134 = math.tanh %133 : vector<8x32xf32>
    %cst_37 = arith.constant 1.000000e+00 : f32
    %135 = vector.broadcast %cst_37 : f32 to vector<8x32xf32>
    %136 = arith.subf %135, %128 : vector<8x32xf32>
    %137 = arith.mulf %136, %134 : vector<8x32xf32>
    %138 = arith.mulf %128, %112 : vector<8x32xf32>
    %139 = arith.addf %137, %138 : vector<8x32xf32>
    %c5_i32 = arith.constant 5 : i32
    %cst_38 = arith.constant dense<0.000000e+00> : vector<8x96xf32>
    %140 = tpu.matmul %139, %0, %cst_38 {dimension_numbers = #tpu.dot_dimension_numbers<[1], [0], [0], [1], [0, 0, 1, 1], [], []>} : vector<8x32xf32>, vector<32x96xf32>, vector<8x96xf32> -> vector<8x96xf32>
    %141 = arith.index_cast %c5_i32 : i32 to index
    %c0_39 = arith.constant 0 : index
    %c0_40 = arith.constant 0 : index
    %142 = vector.load %arg1[%141, %c0_39, %c0_40] : memref<8x8x96xf32, #tpu.memory_space<vmem>>, vector<1x8x96xf32>
    %143 = vector.shape_cast %142 : vector<1x8x96xf32> to vector<8x96xf32>
    %144 = vector.extract_strided_slice %143 {offsets = [0, 0], sizes = [8, 64], strides = [1, 1]} : vector<8x96xf32> to vector<8x64xf32>
    %145 = vector.extract_strided_slice %140 {offsets = [0, 0], sizes = [8, 64], strides = [1, 1]} : vector<8x96xf32> to vector<8x64xf32>
    %146 = arith.addf %144, %145 : vector<8x64xf32>
    %cst_41 = arith.constant 5.000000e-01 : f32
    %147 = vector.broadcast %cst_41 : f32 to vector<8x64xf32>
    %148 = arith.mulf %147, %146 : vector<8x64xf32>
    %149 = math.tanh %148 : vector<8x64xf32>
    %cst_42 = arith.constant 5.000000e-01 : f32
    %150 = vector.broadcast %cst_42 : f32 to vector<8x64xf32>
    %151 = arith.mulf %150, %149 : vector<8x64xf32>
    %cst_43 = arith.constant 5.000000e-01 : f32
    %152 = vector.broadcast %cst_43 : f32 to vector<8x64xf32>
    %153 = arith.addf %151, %152 : vector<8x64xf32>
    %154 = vector.extract_strided_slice %153 {offsets = [0, 0], sizes = [8, 32], strides = [1, 1]} : vector<8x64xf32> to vector<8x32xf32>
    %155 = vector.extract_strided_slice %153 {offsets = [0, 32], sizes = [8, 32], strides = [1, 1]} : vector<8x64xf32> to vector<8x32xf32>
    %156 = vector.extract_strided_slice %143 {offsets = [0, 64], sizes = [8, 32], strides = [1, 1]} : vector<8x96xf32> to vector<8x32xf32>
    %157 = vector.extract_strided_slice %140 {offsets = [0, 64], sizes = [8, 32], strides = [1, 1]} : vector<8x96xf32> to vector<8x32xf32>
    %158 = arith.addf %157, %3 : vector<8x32xf32>
    %159 = arith.mulf %154, %158 : vector<8x32xf32>
    %160 = arith.addf %156, %159 : vector<8x32xf32>
    %161 = math.tanh %160 : vector<8x32xf32>
    %cst_44 = arith.constant 1.000000e+00 : f32
    %162 = vector.broadcast %cst_44 : f32 to vector<8x32xf32>
    %163 = arith.subf %162, %155 : vector<8x32xf32>
    %164 = arith.mulf %163, %161 : vector<8x32xf32>
    %165 = arith.mulf %155, %139 : vector<8x32xf32>
    %166 = arith.addf %164, %165 : vector<8x32xf32>
    %c6_i32 = arith.constant 6 : i32
    %cst_45 = arith.constant dense<0.000000e+00> : vector<8x96xf32>
    %167 = tpu.matmul %166, %0, %cst_45 {dimension_numbers = #tpu.dot_dimension_numbers<[1], [0], [0], [1], [0, 0, 1, 1], [], []>} : vector<8x32xf32>, vector<32x96xf32>, vector<8x96xf32> -> vector<8x96xf32>
    %168 = arith.index_cast %c6_i32 : i32 to index
    %c0_46 = arith.constant 0 : index
    %c0_47 = arith.constant 0 : index
    %169 = vector.load %arg1[%168, %c0_46, %c0_47] : memref<8x8x96xf32, #tpu.memory_space<vmem>>, vector<1x8x96xf32>
    %170 = vector.shape_cast %169 : vector<1x8x96xf32> to vector<8x96xf32>
    %171 = vector.extract_strided_slice %170 {offsets = [0, 0], sizes = [8, 64], strides = [1, 1]} : vector<8x96xf32> to vector<8x64xf32>
    %172 = vector.extract_strided_slice %167 {offsets = [0, 0], sizes = [8, 64], strides = [1, 1]} : vector<8x96xf32> to vector<8x64xf32>
    %173 = arith.addf %171, %172 : vector<8x64xf32>
    %cst_48 = arith.constant 5.000000e-01 : f32
    %174 = vector.broadcast %cst_48 : f32 to vector<8x64xf32>
    %175 = arith.mulf %174, %173 : vector<8x64xf32>
    %176 = math.tanh %175 : vector<8x64xf32>
    %cst_49 = arith.constant 5.000000e-01 : f32
    %177 = vector.broadcast %cst_49 : f32 to vector<8x64xf32>
    %178 = arith.mulf %177, %176 : vector<8x64xf32>
    %cst_50 = arith.constant 5.000000e-01 : f32
    %179 = vector.broadcast %cst_50 : f32 to vector<8x64xf32>
    %180 = arith.addf %178, %179 : vector<8x64xf32>
    %181 = vector.extract_strided_slice %180 {offsets = [0, 0], sizes = [8, 32], strides = [1, 1]} : vector<8x64xf32> to vector<8x32xf32>
    %182 = vector.extract_strided_slice %180 {offsets = [0, 32], sizes = [8, 32], strides = [1, 1]} : vector<8x64xf32> to vector<8x32xf32>
    %183 = vector.extract_strided_slice %170 {offsets = [0, 64], sizes = [8, 32], strides = [1, 1]} : vector<8x96xf32> to vector<8x32xf32>
    %184 = vector.extract_strided_slice %167 {offsets = [0, 64], sizes = [8, 32], strides = [1, 1]} : vector<8x96xf32> to vector<8x32xf32>
    %185 = arith.addf %184, %3 : vector<8x32xf32>
    %186 = arith.mulf %181, %185 : vector<8x32xf32>
    %187 = arith.addf %183, %186 : vector<8x32xf32>
    %188 = math.tanh %187 : vector<8x32xf32>
    %cst_51 = arith.constant 1.000000e+00 : f32
    %189 = vector.broadcast %cst_51 : f32 to vector<8x32xf32>
    %190 = arith.subf %189, %182 : vector<8x32xf32>
    %191 = arith.mulf %190, %188 : vector<8x32xf32>
    %192 = arith.mulf %182, %166 : vector<8x32xf32>
    %193 = arith.addf %191, %192 : vector<8x32xf32>
    %c7_i32 = arith.constant 7 : i32
    %cst_52 = arith.constant dense<0.000000e+00> : vector<8x96xf32>
    %194 = tpu.matmul %193, %0, %cst_52 {dimension_numbers = #tpu.dot_dimension_numbers<[1], [0], [0], [1], [0, 0, 1, 1], [], []>} : vector<8x32xf32>, vector<32x96xf32>, vector<8x96xf32> -> vector<8x96xf32>
    %195 = arith.index_cast %c7_i32 : i32 to index
    %c0_53 = arith.constant 0 : index
    %c0_54 = arith.constant 0 : index
    %196 = vector.load %arg1[%195, %c0_53, %c0_54] : memref<8x8x96xf32, #tpu.memory_space<vmem>>, vector<1x8x96xf32>
    %197 = vector.shape_cast %196 : vector<1x8x96xf32> to vector<8x96xf32>
    %198 = vector.extract_strided_slice %197 {offsets = [0, 0], sizes = [8, 64], strides = [1, 1]} : vector<8x96xf32> to vector<8x64xf32>
    %199 = vector.extract_strided_slice %194 {offsets = [0, 0], sizes = [8, 64], strides = [1, 1]} : vector<8x96xf32> to vector<8x64xf32>
    %200 = arith.addf %198, %199 : vector<8x64xf32>
    %cst_55 = arith.constant 5.000000e-01 : f32
    %201 = vector.broadcast %cst_55 : f32 to vector<8x64xf32>
    %202 = arith.mulf %201, %200 : vector<8x64xf32>
    %203 = math.tanh %202 : vector<8x64xf32>
    %cst_56 = arith.constant 5.000000e-01 : f32
    %204 = vector.broadcast %cst_56 : f32 to vector<8x64xf32>
    %205 = arith.mulf %204, %203 : vector<8x64xf32>
    %cst_57 = arith.constant 5.000000e-01 : f32
    %206 = vector.broadcast %cst_57 : f32 to vector<8x64xf32>
    %207 = arith.addf %205, %206 : vector<8x64xf32>
    %208 = vector.extract_strided_slice %207 {offsets = [0, 0], sizes = [8, 32], strides = [1, 1]} : vector<8x64xf32> to vector<8x32xf32>
    %209 = vector.extract_strided_slice %207 {offsets = [0, 32], sizes = [8, 32], strides = [1, 1]} : vector<8x64xf32> to vector<8x32xf32>
    %210 = vector.extract_strided_slice %197 {offsets = [0, 64], sizes = [8, 32], strides = [1, 1]} : vector<8x96xf32> to vector<8x32xf32>
    %211 = vector.extract_strided_slice %194 {offsets = [0, 64], sizes = [8, 32], strides = [1, 1]} : vector<8x96xf32> to vector<8x32xf32>
    %212 = arith.addf %211, %3 : vector<8x32xf32>
    %213 = arith.mulf %208, %212 : vector<8x32xf32>
    %214 = arith.addf %210, %213 : vector<8x32xf32>
    %215 = math.tanh %214 : vector<8x32xf32>
    %cst_58 = arith.constant 1.000000e+00 : f32
    %216 = vector.broadcast %cst_58 : f32 to vector<8x32xf32>
    %217 = arith.subf %216, %209 : vector<8x32xf32>
    %218 = arith.mulf %217, %215 : vector<8x32xf32>
    %219 = arith.mulf %209, %193 : vector<8x32xf32>
    %220 = arith.addf %218, %219 : vector<8x32xf32>
    %c8_i32 = arith.constant 8 : i32
    %c0_59 = arith.constant 0 : index
    %c0_60 = arith.constant 0 : index
    %221 = vector.load %arg4[%c0_59, %c0_60] : memref<8x32xf32, #tpu.memory_space<vmem>>, vector<8x32xf32>
    tpu.vector_store %arg4[%c0_59, %c0_60], %220 {strides = array<i32>} : memref<8x32xf32, #tpu.memory_space<vmem>>, vector<8x32xf32>,
    return
  }
  func.func @transform_0(%arg0: i32) -> (i32, i32, i32) {
    %c0_i32 = arith.constant 0 : i32
    %c0_i32_0 = arith.constant 0 : i32
    %c0_i32_1 = arith.constant 0 : i32
    return %c0_i32, %arg0, %c0_i32_0 : i32, i32, i32
  }
  func.func @transform_1(%arg0: i32) -> (i32, i32) {
    %c0_i32 = arith.constant 0 : i32
    %c0_i32_0 = arith.constant 0 : i32
    %c0_i32_1 = arith.constant 0 : i32
    return %c0_i32, %c0_i32_0 : i32, i32
  }
  func.func @transform_2(%arg0: i32) -> (i32, i32) {
    %c0_i32 = arith.constant 0 : i32
    %c0_i32_0 = arith.constant 0 : i32
    %c0_i32_1 = arith.constant 0 : i32
    return %c0_i32, %c0_i32_0 : i32, i32
  }
  func.func @transform_3(%arg0: i32) -> (i32, i32) {
    %c0_i32 = arith.constant 0 : i32
    %c0_i32_0 = arith.constant 0 : i32
    return %arg0, %c0_i32 : i32, i32
  }
}

</mosaic_0001>

<llo_original>
// kernel: tpu_custom_call.1
$region0: #{tpu_custom_call.1}
  #allocation0 [shape = 'u32[]', space=smem, size = 0x4, offset = 0x4, fixed_abs, tag = 'smem constant byte address 0x4 - core index']
  #allocation1 [shape = 'u32[144,128]{1,0:T(1,128)}', space=vmem, size = 0x12000, scoped, tag = 'internal scratch']
  %s0 = inlined_call_operand.hbm [shape: f32[8,32,96], index: 0, kind: input, shape index: {}]
  %s1 = inlined_call_operand.hbm [shape: f32[32,96], index: 1, kind: input, shape index: {}]
  %s2 = inlined_call_operand.vmem [shape: f32[1,32], index: 2, kind: input, shape index: {}]
  %s3 = inlined_call_operand.hbm [shape: f32[32,32], index: 3, kind: output, shape index: {}]
  %s4 = sld [smem:[#allocation0]]
  $region53: #{tpu_custom_call.1} parent=0
    _
  %s6 = ssub.s32 1, %s4
  %s7 = scalar_select 0, %s6, %s4
  $region1: #{tpu_custom_call.1} parent=0
    #allocation2 [shape = 'u8[65536]{0}', space=vmem, size = 0x10000, scoped, tag = 'input window, operand 0']
    #allocation3 [shape = 's32[2]{0}', space=sflag, size = 0x8, scoped, tag = 'scoped memory for tpu_custom_call.1']
    #allocation4 [shape = 's32[2]{0}', space=sflag, size = 0x8, scoped, tag = 'scoped memory for tpu_custom_call.1']
    #allocation5 [shape = 'u8[16384]{0}', space=vmem, size = 0x4000, scoped, tag = 'input window, operand 1, single buffered']
    #allocation6 [shape = 's32[1]{0}', space=sflag, size = 0x4, scoped, tag = 'scoped memory for tpu_custom_call.1']
    #allocation7 [shape = 'u8[8192]{0}', space=vmem, size = 0x2000, scoped, tag = 'output window, operand 0']
    %8 = vsyncpa [#allocation3], 0
    %s9 = scalar_lea.sflag [#allocation3], 1
    %10 = vsyncpa %s9, 0
    %11 = vsyncpa [#allocation6], 0
    %12 = vsyncpa [#allocation4], 0
    %s13 = scalar_lea.sflag [#allocation4], 1
    %14 = vsyncpa %s13, 0
    loop: start=0, step=1, limit=6
    $region2: #{tpu_custom_call.1} parent=1 // loop_pre_header
      _
    $region3: #{tpu_custom_call.1} parent=1 // loop_header
      %s16 = sphi 0, %s20
      %p17 = scmp.ge.s32.totalorder %s16, 6
      %s26 = sphi 0, %s28
      %s29 = sphi 0, %s26
      %s30 = sphi 0, %s29
      %s46 = sphi 0, %s30
      %s50 = sphi 0, %s50
      %s52 = sphi 0, %s50
      %s53 = sphi 0, %s52
      %s67 = sphi 0, %s53
      %s71 = sphi 0, %s71
      %s73 = sphi 0, %s71
      %s74 = sphi 0, %s73
      %s88 = sphi 0, %s74
      %s94 = sphi 0, %s96
      %s97 = sphi 0, %s94
      %s98 = sphi 0, %s97
      %s114 = sphi 0, %s98
    $region4: #{tpu_custom_call.1} parent=1 // loop_header_branch
      %19 = sbr.rel (%p17) target = $region8
    $region5: #{tpu_custom_call.1} parent=1 // loop_body
      %s21 = ssub.s32 %s16, 1
      %s22 = ssub.s32 %s16, 2
      %s23 = sadd.s32 %s16, 1
      %s24 = ssub.s32 %s16, %s23
      %p25 = scmp.eq.s32.totalorder %s24, 0
      %s27 = sadd.s32 %s26, 1
      %s28 = scalar_select %p25, %s26, %s27
      %p31 = pneg %p25
      %p32 = scmp.eq.s32.totalorder %s16, 3
      %p33 = por %p31, %p32
      %p34 = scmp.ne.s32.totalorder %s26, %s29
      %p35 = scmp.eq.s32.totalorder %s16, 0
      %p36 = por %p34, %p35
      %p37 = scmp.ne.s32.totalorder %s26, %s29
      %p38 = scmp.eq.s32.totalorder %s21, 3
      %p39 = por %p37, %p38
      %p40 = scmp.ne.s32.totalorder %s29, %s30
      %p41 = scmp.eq.s32.totalorder %s21, 0
      %p42 = por %p40, %p41
      %p43 = scmp.ne.s32.totalorder %s29, %s30
      %p44 = scmp.eq.s32.totalorder %s22, 3
      %p45 = por %p43, %p44
      %p47 = scmp.ne.s32.totalorder %s30, %s46
      %p48 = scmp.eq.s32.totalorder %s22, 0
      %p49 = por %p47, %p48
      %s51 = sadd.s32 %s50, 1
      %p54 = scmp.eq.s32.totalorder %s16, 3
      %p55 = scmp.ne.s32.totalorder %s50, %s52
      %p56 = scmp.eq.s32.totalorder %s16, 0
      %p57 = por %p55, %p56
      %p58 = scmp.ne.s32.totalorder %s50, %s52
      %p59 = scmp.eq.s32.totalorder %s21, 3
      %p60 = por %p58, %p59
      %p61 = scmp.ne.s32.totalorder %s52, %s53
      %p62 = scmp.eq.s32.totalorder %s21, 0
      %p63 = por %p61, %p62
      %p64 = scmp.ne.s32.totalorder %s52, %s53
      %p65 = scmp.eq.s32.totalorder %s22, 3
      %p66 = por %p64, %p65
      %p68 = scmp.ne.s32.totalorder %s53, %s67
      %p69 = scmp.eq.s32.totalorder %s22, 0
      %p70 = por %p68, %p69
      %s72 = sadd.s32 %s71, 1
      %p75 = scmp.eq.s32.totalorder %s16, 3
      %p76 = scmp.ne.s32.totalorder %s71, %s73
      %p77 = scmp.eq.s32.totalorder %s16, 0
      %p78 = por %p76, %p77
      %p79 = scmp.ne.s32.totalorder %s71, %s73
      %p80 = scmp.eq.s32.totalorder %s21, 3
      %p81 = por %p79, %p80
      %p82 = scmp.ne.s32.totalorder %s73, %s74
      %p83 = scmp.eq.s32.totalorder %s21, 0
      %p84 = por %p82, %p83
      %p85 = scmp.ne.s32.totalorder %s73, %s74
      %p86 = scmp.eq.s32.totalorder %s22, 3
      %p87 = por %p85, %p86
      %p89 = scmp.ne.s32.totalorder %s74, %s88
      %p90 = scmp.eq.s32.totalorder %s22, 0
      %p91 = por %p89, %p90
      %s92 = ssub.s32 %s16, %s23
      %p93 = scmp.eq.s32.totalorder %s92, 0
      %s95 = sadd.s32 %s94, 1
      %s96 = scalar_select %p93, %s94, %s95
      %p99 = pneg %p93
      %p100 = scmp.eq.s32.totalorder %s16, 3
      %p101 = por %p99, %p100
      %p102 = scmp.ne.s32.totalorder %s94, %s97
      %p103 = scmp.eq.s32.totalorder %s16, 0
      %p104 = por %p102, %p103
      %p105 = scmp.ne.s32.totalorder %s94, %s97
      %p106 = scmp.eq.s32.totalorder %s21, 3
      %p107 = por %p105, %p106
      %p108 = scmp.ne.s32.totalorder %s97, %s98
      %p109 = scmp.eq.s32.totalorder %s21, 0
      %p110 = por %p108, %p109
      %p111 = scmp.ne.s32.totalorder %s97, %s98
      %p112 = scmp.eq.s32.totalorder %s22, 3
      %p113 = por %p111, %p112
      %p115 = scmp.ne.s32.totalorder %s98, %s114
      %p116 = scmp.eq.s32.totalorder %s22, 0
      %p117 = por %p115, %p116
      %p118 = scmp.le.s32.totalorder 1, %s16
      %p119 = scmp.lt.s32.totalorder %s16, 5
      %p120 = pnand %p118, %p119
      %p121 = pneg %p120
      // Predicated region
      $region9: #{tpu_custom_call.1} parent=5 // pred_check
        _
      $region10: #{tpu_custom_call.1} parent=5 // pred_check_branch
        %123 = sbr.rel (%p120) target = $region12
      $region11: #{tpu_custom_call.1} parent=5 // pred_region
        %s124 = ssub.s32 %s16, 1
        // Predicated region
        $region13: #{tpu_custom_call.1} parent=11 // pred_check
          %p125 = pneg %p63
        $region14: #{tpu_custom_call.1} parent=11 // pred_check_branch
          %127 = sbr.rel (%p125) target = $region16
        $region15: #{tpu_custom_call.1} parent=11 // pred_region
          %s129 = ssub.s32 512, 512
          %130 = vsyncadd [#allocation6], %s129
          %s131 = sshll.u32 [#allocation5], 4
          %s132 = int_to_ptr.vmem [resolvable:$true] %s131
          %137 = dma.hbm_to_vmem [thread:$0]  %s1, 512, %s132, [#allocation6], 128, 128, 8
        $region16: #{tpu_custom_call.1} parent=11 // pred_fallthru
          _
        // Predicated region
        $region17: #{tpu_custom_call.1} parent=11 // pred_check
          %p138 = pneg %p84
        $region18: #{tpu_custom_call.1} parent=11 // pred_check_branch
          %140 = sbr.rel (%p138) target = $region20
        $region19: #{tpu_custom_call.1} parent=11 // pred_region
          _
        $region20: #{tpu_custom_call.1} parent=11 // pred_fallthru
          _
      $region12: #{tpu_custom_call.1} parent=5 // pred_fallthru
        _
      %p141 = scmp.lt.s32.totalorder %s16, 4
      // Predicated region
      $region21: #{tpu_custom_call.1} parent=5 // pred_check
        %p142 = pneg %p141
      $region22: #{tpu_custom_call.1} parent=5 // pred_check_branch
        %144 = sbr.rel (%p142) target = $region24
      $region23: #{tpu_custom_call.1} parent=5 // pred_region
        // Predicated region
        $region25: #{tpu_custom_call.1} parent=23 // pred_check
          %p145 = pneg %p36
        $region26: #{tpu_custom_call.1} parent=23 // pred_check_branch
          %147 = sbr.rel (%p145) target = $region28
        $region27: #{tpu_custom_call.1} parent=23 // pred_region
          %s148 = sand.u32 %s26, 1
          %s149 = scalar_lea.sflag [#allocation3], %s148
          %s150 = sand.u32 %s26, 1
          %s151 = smul.addr %s150, 64
          %s152 = scalar_lea.vmem [#allocation2], %s151
          %s154 = ssub.s32 1024, 1024
          %155 = vsyncadd %s149, %s154
          %s156 = smul.addr %s16, 128
          %s157 = scalar_lea.hbm %s0, %s156
          %s158 = sshll.u32 %s152, 4
          %s159 = int_to_ptr.vmem [resolvable:$true] %s158
          %164 = dma.hbm_to_vmem [thread:$0]  %s157, 1024, %s159, %s149, 512, 128, 8
        $region28: #{tpu_custom_call.1} parent=23 // pred_fallthru
          _
      $region24: #{tpu_custom_call.1} parent=5 // pred_fallthru
        _
      %p165 = scmp.le.s32.totalorder 1, %s16
      %p166 = scmp.lt.s32.totalorder %s16, 5
      %p167 = pnand %p165, %p166
      %p168 = pneg %p167
      // Predicated region
      $region29: #{tpu_custom_call.1} parent=5 // pred_check
        _
      $region30: #{tpu_custom_call.1} parent=5 // pred_check_branch
        %170 = sbr.rel (%p167) target = $region32
      $region31: #{tpu_custom_call.1} parent=5 // pred_region
        %s171 = ssub.s32 %s16, 1
        %s172 = sand.u32 %s29, 1
        %s173 = scalar_lea.sflag [#allocation3], %s172
        %s174 = sand.u32 %s29, 1
        %s175 = smul.addr %s174, 64
        %s176 = scalar_lea.vmem [#allocation2], %s175
        // Predicated region
        $region33: #{tpu_custom_call.1} parent=31 // pred_check
          %p177 = pneg %p42
        $region34: #{tpu_custom_call.1} parent=31 // pred_check_branch
          %179 = sbr.rel (%p177) target = $region36
        $region35: #{tpu_custom_call.1} parent=31 // pred_region
          %180 = dma.done %s173, 1024
        $region36: #{tpu_custom_call.1} parent=31 // pred_fallthru
          _
        // Predicated region
        $region37: #{tpu_custom_call.1} parent=31 // pred_check
          %p181 = pneg %p63
        $region38: #{tpu_custom_call.1} parent=31 // pred_check_branch
          %183 = sbr.rel (%p181) target = $region40
        $region39: #{tpu_custom_call.1} parent=31 // pred_region
          %184 = dma.done [#allocation6], 512
        $region40: #{tpu_custom_call.1} parent=31 // pred_fallthru
          _
        %s185 = sand.u32 %s29, 1
        %s186 = scalar_lea.sflag [#allocation3], %s185
        %s187 = sand.u32 %s29, 1
        %s188 = smul.addr %s187, 64
        %s189 = scalar_lea.vmem [#allocation2], %s188
        %p190 = pneg %p42
        %p191 = pneg %p39
        %p192 = pneg %p63
        %p193 = pneg %p60
        %p194 = pneg %p84
        %p195 = pneg %p81
        %p196 = pneg %p110
        %p197 = pneg %p107
        %s198 = sand.u32 %s97, 1
        %s199 = scalar_lea.sflag [#allocation4], %s198
        %s200 = sand.u32 %s97, 1
        %s201 = smul.addr %s200, 8
        %s202 = scalar_lea.vmem [#allocation7], %s201
        %v203 = vld [vmem:[#allocation5] sm:$0xff]
        %v204 = vld [vmem:[#allocation5 + $0x8] sm:$0xff]
        %v205 = vld [vmem:[#allocation5 + $0x10] sm:$0xff]
        %v206 = vld [vmem:[#allocation5 + $0x18] sm:$0xff]
        %v207 = vld [vmem:[%s2] sm:$0x1]
        %v209 = vlaneseq
        %v210 = vshrl.u32 %v209, 7
        %v211 = vsub.s32 0, %v210
        %v212 = vrot.slane %v207, %v211
        %vm213 = vcmask 261120
        %v215 = vsel %vm213, 0.0, 0
        %217 = vmatprep.subr.mxu0 0.0
        %218 = vmatpush1.msra.mxu0 %v203
        %219 = vmatprep.subr.mxu0 0.0
        %220 = vmatpush1.msra.mxu0 %v204
        %221 = vmatprep.subr.mxu0 0.0
        %222 = vmatpush1.msra.mxu0 %v205
        %223 = vmatprep.subr.mxu0 0.0
        %224 = vmatpush1.msra.mxu0 %v206
        %225 = vmatprep.subr.mxu0 0.0
        %226 = vmatpush1.msra.mxu0 0.0
        %227 = vmatprep.subr.mxu0 0.0
        %228 = vmatpush1.msra.mxu0 0.0
        %229 = vmatprep.subr.mxu0 0.0
        %230 = vmatpush1.msra.mxu0 0.0
        %231 = vmatprep.subr.mxu0 0.0
        %232 = vmatpush1.msra.mxu0 0.0
        %233 = vmatprep.subr.mxu0 0.0
        %234 = vmatpush1.msra.mxu0 0.0
        %235 = vmatprep.subr.mxu0 0.0
        %236 = vmatpush1.msra.mxu0 0.0
        %237 = vmatprep.subr.mxu0 0.0
        %238 = vmatpush1.msra.mxu0 0.0
        %239 = vmatprep.subr.mxu0 0.0
        %240 = vmatpush1.msra.mxu0 0.0
        %241 = vmatprep.subr.mxu0 0.0
        %242 = vmatpush1.msra.mxu0 0.0
        %243 = vmatprep.subr.mxu0 0.0
        %244 = vmatpush1.msra.mxu0 0.0
        %245 = vmatprep.subr.mxu0 0.0
        %246 = vmatpush1.msra.mxu0 0.0
        %247 = vmatprep.subr.mxu0 0.0
        %248 = vmatpush1.msra.mxu0 0.0
        %249 = vmatprep.subr.mxu0 0.0
        %250 = vmatpush1.msra.mxu0 0.0
        %251 = vmatprep.subr.mxu0 0.0
        %252 = vmatpush1.msra.mxu0 0.0
        %253 = vmatprep.subr.mxu0 0.0
        %254 = vmatpush1.msra.mxu0 0.0
        %255 = vmatprep.subr.mxu0 0.0
        %256 = vmatpush1.msra.mxu0 0.0
        %257 = vmatprep.subr.mxu0 0.0
        %258 = vmatpush1.msra.mxu0 0.0
        %259 = vmatprep.subr.mxu0 0.0
        %260 = vmatpush1.msra.mxu0 0.0
        %261 = vmatprep.subr.mxu0 0.0
        %262 = vmatpush1.msra.mxu0 0.0
        %263 = vmatprep.subr.mxu0 0.0
        %264 = vmatpush1.msra.mxu0 0.0
        %265 = vmatprep.subr.mxu0 0.0
        %266 = vmatpush1.msra.mxu0 0.0
        %267 = vmatprep.subr.mxu0 0.0
        %268 = vmatpush1.msra.mxu0 0.0
        %269 = vmatprep.subr.mxu0 0.0
        %270 = vmatpush1.msra.mxu0 0.0
        %271 = vmatprep.subr.mxu0 0.0
        %272 = vmatpush1.msra.mxu0 0.0
        %273 = vmatprep.subr.mxu0 0.0
        %274 = vmatpush1.msra.mxu0 0.0
        %275 = vmatprep.subr.mxu0 0.0
        %276 = vmatpush1.msra.mxu0 0.0
        %277 = vmatprep.subr.mxu0 0.0
        %278 = vmatpush1.msra.mxu0 0.0
        %279 = vmatprep.subr.mxu0 0.0
        %280 = vmatpush1.msra.mxu0 0.0
        %281 = vmatprep.mubr.f32.mxu0 0.0
        %282 = vmatmul.mubr.f32.gmra.mrb[0].mxu0 %v215
        %v283 = vpop.f32.mrb[0].mxu0
        %v284 = vadd.f32 0.0, %v283
        %v285 = vpop.f32.mrb[0].mxu0
        %286 = vdwg.mxu0
        %v287 = vld [vmem:[%s176] sm:$0xff]
        %v288 = vadd.f32 %v287, %v284
        %v289 = vmul.f32 %v288, 0.5
        %v290 = vtanh.pop %v289
        %v291 = vmul.f32 %v290, 0.5
        %v292 = vadd.f32 %v291, 0.5
        %293 = vrot.lane.b32.xlu0 %v212, 64
        %v294 = vpop.permute.xlu0 %293
        %v296 = vadd.f32 %v284, %v294
        %298 = vrot.lane.b32.xlu0 %v296, 64
        %v299 = vpop.permute.xlu0 %298
        %v301 = vmul.f32 %v292, %v299
        %303 = vrot.lane.b32.xlu0 %v301, 64
        %v304 = vpop.permute.xlu0 %303
        %v306 = vadd.f32 %v287, %v304
        %v307 = vtanh.pop %v306
        %v308 = vsub.f32 1.0, %v292
        %310 = vrot.lane.b32.xlu0 %v307, 96
        %v311 = vpop.permute.xlu0 %310
        %v313 = vmul.f32 %v308, %v311
        %v314 = vmul.f32 %v292, 0.0
        %v315 = vadd.f32 %v313, %v314
        %317 = vrot.lane.b32.xlu0 %v315, 96
        %v318 = vpop.permute.xlu0 %317
        %v319 = vsel %vm213, %v318, 0
        %321 = vmatprep.subr.mxu0 0.0
        %322 = vmatpush1.msra.mxu0 %v203
        %323 = vmatprep.subr.mxu0 0.0
        %324 = vmatpush1.msra.mxu0 %v204
        %325 = vmatprep.subr.mxu0 0.0
        %326 = vmatpush1.msra.mxu0 %v205
        %327 = vmatprep.subr.mxu0 0.0
        %328 = vmatpush1.msra.mxu0 %v206
        %329 = vmatprep.subr.mxu0 0.0
        %330 = vmatpush1.msra.mxu0 0.0
        %331 = vmatprep.subr.mxu0 0.0
        %332 = vmatpush1.msra.mxu0 0.0
        %333 = vmatprep.subr.mxu0 0.0
        %334 = vmatpush1.msra.mxu0 0.0
        %335 = vmatprep.subr.mxu0 0.0
        %336 = vmatpush1.msra.mxu0 0.0
        %337 = vmatprep.subr.mxu0 0.0
        %338 = vmatpush1.msra.mxu0 0.0
        %339 = vmatprep.subr.mxu0 0.0
        %340 = vmatpush1.msra.mxu0 0.0
        %341 = vmatprep.subr.mxu0 0.0
        %342 = vmatpush1.msra.mxu0 0.0
        %343 = vmatprep.subr.mxu0 0.0
        %344 = vmatpush1.msra.mxu0 0.0
        %345 = vmatprep.subr.mxu0 0.0
        %346 = vmatpush1.msra.mxu0 0.0
        %347 = vmatprep.subr.mxu0 0.0
        %348 = vmatpush1.msra.mxu0 0.0
        %349 = vmatprep.subr.mxu0 0.0
        %350 = vmatpush1.msra.mxu0 0.0
        %351 = vmatprep.subr.mxu0 0.0
        %352 = vmatpush1.msra.mxu0 0.0
        %353 = vmatprep.subr.mxu0 0.0
        %354 = vmatpush1.msra.mxu0 0.0
        %355 = vmatprep.subr.mxu0 0.0
        %356 = vmatpush1.msra.mxu0 0.0
        %357 = vmatprep.subr.mxu0 0.0
        %358 = vmatpush1.msra.mxu0 0.0
        %359 = vmatprep.subr.mxu0 0.0
        %360 = vmatpush1.msra.mxu0 0.0
        %361 = vmatprep.subr.mxu0 0.0
        %362 = vmatpush1.msra.mxu0 0.0
        %363 = vmatprep.subr.mxu0 0.0
        %364 = vmatpush1.msra.mxu0 0.0
        %365 = vmatprep.subr.mxu0 0.0
        %366 = vmatpush1.msra.mxu0 0.0
        %367 = vmatprep.subr.mxu0 0.0
        %368 = vmatpush1.msra.mxu0 0.0
        %369 = vmatprep.subr.mxu0 0.0
        %370 = vmatpush1.msra.mxu0 0.0
        %371 = vmatprep.subr.mxu0 0.0
        %372 = vmatpush1.msra.mxu0 0.0
        %373 = vmatprep.subr.mxu0 0.0
        %374 = vmatpush1.msra.mxu0 0.0
        %375 = vmatprep.subr.mxu0 0.0
        %376 = vmatpush1.msra.mxu0 0.0
        %377 = vmatprep.subr.mxu0 0.0
        %378 = vmatpush1.msra.mxu0 0.0
        %379 = vmatprep.subr.mxu0 0.0
        %380 = vmatpush1.msra.mxu0 0.0
        %381 = vmatprep.subr.mxu0 0.0
        %382 = vmatpush1.msra.mxu0 0.0
        %383 = vmatprep.subr.mxu0 0.0
        %384 = vmatpush1.msra.mxu0 0.0
        %385 = vmatprep.mubr.f32.mxu0 0.0
        %386 = vmatmul.mubr.f32.gmra.mrb[0].mxu0 %v319
        %v387 = vpop.f32.mrb[0].mxu0
        %v388 = vadd.f32 0.0, %v387
        %v389 = vpop.f32.mrb[0].mxu0
        %390 = vdwg.mxu0
        %s391 = scalar_lea.vmem %s176, 8 [#allocation2]
        %v392 = vld [vmem:[%s391] sm:$0xff]
        %v393 = vadd.f32 %v392, %v388
        %v394 = vmul.f32 %v393, 0.5
        %v395 = vtanh.pop %v394
        %v396 = vmul.f32 %v395, 0.5
        %v397 = vadd.f32 %v396, 0.5
        %v398 = vadd.f32 %v388, %v294
        %400 = vrot.lane.b32.xlu0 %v398, 64
        %v401 = vpop.permute.xlu0 %400
        %v403 = vmul.f32 %v397, %v401
        %405 = vrot.lane.b32.xlu0 %v403, 64
        %v406 = vpop.permute.xlu0 %405
        %v408 = vadd.f32 %v392, %v406
        %v409 = vtanh.pop %v408
        %v410 = vsub.f32 1.0, %v397
        %412 = vrot.lane.b32.xlu0 %v409, 96
        %v413 = vpop.permute.xlu0 %412
        %v415 = vmul.f32 %v410, %v413
        %v416 = vmul.f32 %v397, %v315
        %v417 = vadd.f32 %v415, %v416
        %419 = vrot.lane.b32.xlu0 %v417, 96
        %v420 = vpop.permute.xlu0 %419
        %v421 = vsel %vm213, %v420, 0
        %423 = vmatprep.subr.mxu0 0.0
        %424 = vmatpush1.msra.mxu0 %v203
        %425 = vmatprep.subr.mxu0 0.0
        %426 = vmatpush1.msra.mxu0 %v204
        %427 = vmatprep.subr.mxu0 0.0
        %428 = vmatpush1.msra.mxu0 %v205
        %429 = vmatprep.subr.mxu0 0.0
        %430 = vmatpush1.msra.mxu0 %v206
        %431 = vmatprep.subr.mxu0 0.0
        %432 = vmatpush1.msra.mxu0 0.0
        %433 = vmatprep.subr.mxu0 0.0
        %434 = vmatpush1.msra.mxu0 0.0
        %435 = vmatprep.subr.mxu0 0.0
        %436 = vmatpush1.msra.mxu0 0.0
        %437 = vmatprep.subr.mxu0 0.0
        %438 = vmatpush1.msra.mxu0 0.0
        %439 = vmatprep.subr.mxu0 0.0
        %440 = vmatpush1.msra.mxu0 0.0
        %441 = vmatprep.subr.mxu0 0.0
        %442 = vmatpush1.msra.mxu0 0.0
        %443 = vmatprep.subr.mxu0 0.0
        %444 = vmatpush1.msra.mxu0 0.0
        %445 = vmatprep.subr.mxu0 0.0
        %446 = vmatpush1.msra.mxu0 0.0
        %447 = vmatprep.subr.mxu0 0.0
        %448 = vmatpush1.msra.mxu0 0.0
        %449 = vmatprep.subr.mxu0 0.0
        %450 = vmatpush1.msra.mxu0 0.0
        %451 = vmatprep.subr.mxu0 0.0
        %452 = vmatpush1.msra.mxu0 0.0
        %453 = vmatprep.subr.mxu0 0.0
        %454 = vmatpush1.msra.mxu0 0.0
        %455 = vmatprep.subr.mxu0 0.0
        %456 = vmatpush1.msra.mxu0 0.0
        %457 = vmatprep.subr.mxu0 0.0
        %458 = vmatpush1.msra.mxu0 0.0
        %459 = vmatprep.subr.mxu0 0.0
        %460 = vmatpush1.msra.mxu0 0.0
        %461 = vmatprep.subr.mxu0 0.0
        %462 = vmatpush1.msra.mxu0 0.0
        %463 = vmatprep.subr.mxu0 0.0
        %464 = vmatpush1.msra.mxu0 0.0
        %465 = vmatprep.subr.mxu0 0.0
        %466 = vmatpush1.msra.mxu0 0.0
        %467 = vmatprep.subr.mxu0 0.0
        %468 = vmatpush1.msra.mxu0 0.0
        %469 = vmatprep.subr.mxu0 0.0
        %470 = vmatpush1.msra.mxu0 0.0
        %471 = vmatprep.subr.mxu0 0.0
        %472 = vmatpush1.msra.mxu0 0.0
        %473 = vmatprep.subr.mxu0 0.0
        %474 = vmatpush1.msra.mxu0 0.0
        %475 = vmatprep.subr.mxu0 0.0
        %476 = vmatpush1.msra.mxu0 0.0
        %477 = vmatprep.subr.mxu0 0.0
        %478 = vmatpush1.msra.mxu0 0.0
        %479 = vmatprep.subr.mxu0 0.0
        %480 = vmatpush1.msra.mxu0 0.0
        %481 = vmatprep.subr.mxu0 0.0
        %482 = vmatpush1.msra.mxu0 0.0
        %483 = vmatprep.subr.mxu0 0.0
        %484 = vmatpush1.msra.mxu0 0.0
        %485 = vmatprep.subr.mxu0 0.0
        %486 = vmatpush1.msra.mxu0 0.0
        %487 = vmatprep.mubr.f32.mxu0 0.0
        %488 = vmatmul.mubr.f32.gmra.mrb[0].mxu0 %v421
        %v489 = vpop.f32.mrb[0].mxu0
        %v490 = vadd.f32 0.0, %v489
        %v491 = vpop.f32.mrb[0].mxu0
        %492 = vdwg.mxu0
        %s493 = scalar_lea.vmem %s176, 16 [#allocation2]
        %v494 = vld [vmem:[%s493] sm:$0xff]
        %v495 = vadd.f32 %v494, %v490
        %v496 = vmul.f32 %v495, 0.5
        %v497 = vtanh.pop %v496
        %v498 = vmul.f32 %v497, 0.5
        %v499 = vadd.f32 %v498, 0.5
        %v500 = vadd.f32 %v490, %v294
        %502 = vrot.lane.b32.xlu0 %v500, 64
        %v503 = vpop.permute.xlu0 %502
        %v505 = vmul.f32 %v499, %v503
        %507 = vrot.lane.b32.xlu0 %v505, 64
        %v508 = vpop.permute.xlu0 %507
        %v510 = vadd.f32 %v494, %v508
        %v511 = vtanh.pop %v510
        %v512 = vsub.f32 1.0, %v499
        %514 = vrot.lane.b32.xlu0 %v511, 96
        %v515 = vpop.permute.xlu0 %514
        %v517 = vmul.f32 %v512, %v515
        %v518 = vmul.f32 %v499, %v417
        %v519 = vadd.f32 %v517, %v518
        %521 = vrot.lane.b32.xlu0 %v519, 96
        %v522 = vpop.permute.xlu0 %521
        %v523 = vsel %vm213, %v522, 0
        %525 = vmatprep.subr.mxu0 0.0
        %526 = vmatpush1.msra.mxu0 %v203
        %527 = vmatprep.subr.mxu0 0.0
        %528 = vmatpush1.msra.mxu0 %v204
        %529 = vmatprep.subr.mxu0 0.0
        %530 = vmatpush1.msra.mxu0 %v205
        %531 = vmatprep.subr.mxu0 0.0
        %532 = vmatpush1.msra.mxu0 %v206
        %533 = vmatprep.subr.mxu0 0.0
        %534 = vmatpush1.msra.mxu0 0.0
        %535 = vmatprep.subr.mxu0 0.0
        %536 = vmatpush1.msra.mxu0 0.0
        %537 = vmatprep.subr.mxu0 0.0
        %538 = vmatpush1.msra.mxu0 0.0
        %539 = vmatprep.subr.mxu0 0.0
        %540 = vmatpush1.msra.mxu0 0.0
        %541 = vmatprep.subr.mxu0 0.0
        %542 = vmatpush1.msra.mxu0 0.0
        %543 = vmatprep.subr.mxu0 0.0
        %544 = vmatpush1.msra.mxu0 0.0
        %545 = vmatprep.subr.mxu0 0.0
        %546 = vmatpush1.msra.mxu0 0.0
        %547 = vmatprep.subr.mxu0 0.0
        %548 = vmatpush1.msra.mxu0 0.0
        %549 = vmatprep.subr.mxu0 0.0
        %550 = vmatpush1.msra.mxu0 0.0
        %551 = vmatprep.subr.mxu0 0.0
        %552 = vmatpush1.msra.mxu0 0.0
        %553 = vmatprep.subr.mxu0 0.0
        %554 = vmatpush1.msra.mxu0 0.0
        %555 = vmatprep.subr.mxu0 0.0
        %556 = vmatpush1.msra.mxu0 0.0
        %557 = vmatprep.subr.mxu0 0.0
        %558 = vmatpush1.msra.mxu0 0.0
        %559 = vmatprep.subr.mxu0 0.0
        %560 = vmatpush1.msra.mxu0 0.0
        %561 = vmatprep.subr.mxu0 0.0
        %562 = vmatpush1.msra.mxu0 0.0
        %563 = vmatprep.subr.mxu0 0.0
        %564 = vmatpush1.msra.mxu0 0.0
        %565 = vmatprep.subr.mxu0 0.0
        %566 = vmatpush1.msra.mxu0 0.0
        %567 = vmatprep.subr.mxu0 0.0
        %568 = vmatpush1.msra.mxu0 0.0
        %569 = vmatprep.subr.mxu0 0.0
        %570 = vmatpush1.msra.mxu0 0.0
        %571 = vmatprep.subr.mxu0 0.0
        %572 = vmatpush1.msra.mxu0 0.0
        %573 = vmatprep.subr.mxu0 0.0
        %574 = vmatpush1.msra.mxu0 0.0
        %575 = vmatprep.subr.mxu0 0.0
        %576 = vmatpush1.msra.mxu0 0.0
        %577 = vmatprep.subr.mxu0 0.0
        %578 = vmatpush1.msra.mxu0 0.0
        %579 = vmatprep.subr.mxu0 0.0
        %580 = vmatpush1.msra.mxu0 0.0
        %581 = vmatprep.subr.mxu0 0.0
        %582 = vmatpush1.msra.mxu0 0.0
        %583 = vmatprep.subr.mxu0 0.0
        %584 = vmatpush1.msra.mxu0 0.0
        %585 = vmatprep.subr.mxu0 0.0
        %586 = vmatpush1.msra.mxu0 0.0
        %587 = vmatprep.subr.mxu0 0.0
        %588 = vmatpush1.msra.mxu0 0.0
        %589 = vmatprep.mubr.f32.mxu0 0.0
        %590 = vmatmul.mubr.f32.gmra.mrb[0].mxu0 %v523
        %v591 = vpop.f32.mrb[0].mxu0
        %v592 = vadd.f32 0.0, %v591
        %v593 = vpop.f32.mrb[0].mxu0
        %594 = vdwg.mxu0
        %s595 = scalar_lea.vmem %s176, 24 [#allocation2]
        %v596 = vld [vmem:[%s595] sm:$0xff]
        %v597 = vadd.f32 %v596, %v592
        %v598 = vmul.f32 %v597, 0.5
        %v599 = vtanh.pop %v598
        %v600 = vmul.f32 %v599, 0.5
        %v601 = vadd.f32 %v600, 0.5
        %v602 = vadd.f32 %v592, %v294
        %604 = vrot.lane.b32.xlu0 %v602, 64
        %v605 = vpop.permute.xlu0 %604
        %v607 = vmul.f32 %v601, %v605
        %609 = vrot.lane.b32.xlu0 %v607, 64
        %v610 = vpop.permute.xlu0 %609
        %v612 = vadd.f32 %v596, %v610
        %v613 = vtanh.pop %v612
        %v614 = vsub.f32 1.0, %v601
        %616 = vrot.lane.b32.xlu0 %v613, 96
        %v617 = vpop.permute.xlu0 %616
        %v619 = vmul.f32 %v614, %v617
        %v620 = vmul.f32 %v601, %v519
        %v621 = vadd.f32 %v619, %v620
        %623 = vrot.lane.b32.xlu0 %v621, 96
        %v624 = vpop.permute.xlu0 %623
        %v625 = vsel %vm213, %v624, 0
        %627 = vmatprep.subr.mxu0 0.0
        %628 = vmatpush1.msra.mxu0 %v203
        %629 = vmatprep.subr.mxu0 0.0
        %630 = vmatpush1.msra.mxu0 %v204
        %631 = vmatprep.subr.mxu0 0.0
        %632 = vmatpush1.msra.mxu0 %v205
        %633 = vmatprep.subr.mxu0 0.0
        %634 = vmatpush1.msra.mxu0 %v206
        %635 = vmatprep.subr.mxu0 0.0
        %636 = vmatpush1.msra.mxu0 0.0
        %637 = vmatprep.subr.mxu0 0.0
        %638 = vmatpush1.msra.mxu0 0.0
        %639 = vmatprep.subr.mxu0 0.0
        %640 = vmatpush1.msra.mxu0 0.0
        %641 = vmatprep.subr.mxu0 0.0
        %642 = vmatpush1.msra.mxu0 0.0
        %643 = vmatprep.subr.mxu0 0.0
        %644 = vmatpush1.msra.mxu0 0.0
        %645 = vmatprep.subr.mxu0 0.0
        %646 = vmatpush1.msra.mxu0 0.0
        %647 = vmatprep.subr.mxu0 0.0
        %648 = vmatpush1.msra.mxu0 0.0
        %649 = vmatprep.subr.mxu0 0.0
        %650 = vmatpush1.msra.mxu0 0.0
        %651 = vmatprep.subr.mxu0 0.0
        %652 = vmatpush1.msra.mxu0 0.0
        %653 = vmatprep.subr.mxu0 0.0
        %654 = vmatpush1.msra.mxu0 0.0
        %655 = vmatprep.subr.mxu0 0.0
        %656 = vmatpush1.msra.mxu0 0.0
        %657 = vmatprep.subr.mxu0 0.0
        %658 = vmatpush1.msra.mxu0 0.0
        %659 = vmatprep.subr.mxu0 0.0
        %660 = vmatpush1.msra.mxu0 0.0
        %661 = vmatprep.subr.mxu0 0.0
        %662 = vmatpush1.msra.mxu0 0.0
        %663 = vmatprep.subr.mxu0 0.0
        %664 = vmatpush1.msra.mxu0 0.0
        %665 = vmatprep.subr.mxu0 0.0
        %666 = vmatpush1.msra.mxu0 0.0
        %667 = vmatprep.subr.mxu0 0.0
        %668 = vmatpush1.msra.mxu0 0.0
        %669 = vmatprep.subr.mxu0 0.0
        %670 = vmatpush1.msra.mxu0 0.0
        %671 = vmatprep.subr.mxu0 0.0
        %672 = vmatpush1.msra.mxu0 0.0
        %673 = vmatprep.subr.mxu0 0.0
        %674 = vmatpush1.msra.mxu0 0.0
        %675 = vmatprep.subr.mxu0 0.0
        %676 = vmatpush1.msra.mxu0 0.0
        %677 = vmatprep.subr.mxu0 0.0
        %678 = vmatpush1.msra.mxu0 0.0
        %679 = vmatprep.subr.mxu0 0.0
        %680 = vmatpush1.msra.mxu0 0.0
        %681 = vmatprep.subr.mxu0 0.0
        %682 = vmatpush1.msra.mxu0 0.0
        %683 = vmatprep.subr.mxu0 0.0
        %684 = vmatpush1.msra.mxu0 0.0
        %685 = vmatprep.subr.mxu0 0.0
        %686 = vmatpush1.msra.mxu0 0.0
        %687 = vmatprep.subr.mxu0 0.0
        %688 = vmatpush1.msra.mxu0 0.0
        %689 = vmatprep.subr.mxu0 0.0
        %690 = vmatpush1.msra.mxu0 0.0
        %691 = vmatprep.mubr.f32.mxu0 0.0
        %692 = vmatmul.mubr.f32.gmra.mrb[0].mxu0 %v625
        %v693 = vpop.f32.mrb[0].mxu0
        %v694 = vadd.f32 0.0, %v693
        %v695 = vpop.f32.mrb[0].mxu0
        %696 = vdwg.mxu0
        %s697 = scalar_lea.vmem %s176, 32 [#allocation2]
        %v698 = vld [vmem:[%s697] sm:$0xff]
        %v699 = vadd.f32 %v698, %v694
        %v700 = vmul.f32 %v699, 0.5
        %v701 = vtanh.pop %v700
        %v702 = vmul.f32 %v701, 0.5
        %v703 = vadd.f32 %v702, 0.5
        %v704 = vadd.f32 %v694, %v294
        %706 = vrot.lane.b32.xlu0 %v704, 64
        %v707 = vpop.permute.xlu0 %706
        %v709 = vmul.f32 %v703, %v707
        %711 = vrot.lane.b32.xlu0 %v709, 64
        %v712 = vpop.permute.xlu0 %711
        %v714 = vadd.f32 %v698, %v712
        %v715 = vtanh.pop %v714
        %v716 = vsub.f32 1.0, %v703
        %718 = vrot.lane.b32.xlu0 %v715, 96
        %v719 = vpop.permute.xlu0 %718
        %v721 = vmul.f32 %v716, %v719
        %v722 = vmul.f32 %v703, %v621
        %v723 = vadd.f32 %v721, %v722
        %725 = vrot.lane.b32.xlu0 %v723, 96
        %v726 = vpop.permute.xlu0 %725
        %v727 = vsel %vm213, %v726, 0
        %729 = vmatprep.subr.mxu0 0.0
        %730 = vmatpush1.msra.mxu0 %v203
        %731 = vmatprep.subr.mxu0 0.0
        %732 = vmatpush1.msra.mxu0 %v204
        %733 = vmatprep.subr.mxu0 0.0
        %734 = vmatpush1.msra.mxu0 %v205
        %735 = vmatprep.subr.mxu0 0.0
        %736 = vmatpush1.msra.mxu0 %v206
        %737 = vmatprep.subr.mxu0 0.0
        %738 = vmatpush1.msra.mxu0 0.0
        %739 = vmatprep.subr.mxu0 0.0
        %740 = vmatpush1.msra.mxu0 0.0
        %741 = vmatprep.subr.mxu0 0.0
        %742 = vmatpush1.msra.mxu0 0.0
        %743 = vmatprep.subr.mxu0 0.0
        %744 = vmatpush1.msra.mxu0 0.0
        %745 = vmatprep.subr.mxu0 0.0
        %746 = vmatpush1.msra.mxu0 0.0
        %747 = vmatprep.subr.mxu0 0.0
        %748 = vmatpush1.msra.mxu0 0.0
        %749 = vmatprep.subr.mxu0 0.0
        %750 = vmatpush1.msra.mxu0 0.0
        %751 = vmatprep.subr.mxu0 0.0
        %752 = vmatpush1.msra.mxu0 0.0
        %753 = vmatprep.subr.mxu0 0.0
        %754 = vmatpush1.msra.mxu0 0.0
        %755 = vmatprep.subr.mxu0 0.0
        %756 = vmatpush1.msra.mxu0 0.0
        %757 = vmatprep.subr.mxu0 0.0
        %758 = vmatpush1.msra.mxu0 0.0
        %759 = vmatprep.subr.mxu0 0.0
        %760 = vmatpush1.msra.mxu0 0.0
        %761 = vmatprep.subr.mxu0 0.0
        %762 = vmatpush1.msra.mxu0 0.0
        %763 = vmatprep.subr.mxu0 0.0
        %764 = vmatpush1.msra.mxu0 0.0
        %765 = vmatprep.subr.mxu0 0.0
        %766 = vmatpush1.msra.mxu0 0.0
        %767 = vmatprep.subr.mxu0 0.0
        %768 = vmatpush1.msra.mxu0 0.0
        %769 = vmatprep.subr.mxu0 0.0
        %770 = vmatpush1.msra.mxu0 0.0
        %771 = vmatprep.subr.mxu0 0.0
        %772 = vmatpush1.msra.mxu0 0.0
        %773 = vmatprep.subr.mxu0 0.0
        %774 = vmatpush1.msra.mxu0 0.0
        %775 = vmatprep.subr.mxu0 0.0
        %776 = vmatpush1.msra.mxu0 0.0
        %777 = vmatprep.subr.mxu0 0.0
        %778 = vmatpush1.msra.mxu0 0.0
        %779 = vmatprep.subr.mxu0 0.0
        %780 = vmatpush1.msra.mxu0 0.0
        %781 = vmatprep.subr.mxu0 0.0
        %782 = vmatpush1.msra.mxu0 0.0
        %783 = vmatprep.subr.mxu0 0.0
        %784 = vmatpush1.msra.mxu0 0.0
        %785 = vmatprep.subr.mxu0 0.0
        %786 = vmatpush1.msra.mxu0 0.0
        %787 = vmatprep.subr.mxu0 0.0
        %788 = vmatpush1.msra.mxu0 0.0
        %789 = vmatprep.subr.mxu0 0.0
        %790 = vmatpush1.msra.mxu0 0.0
        %791 = vmatprep.subr.mxu0 0.0
        %792 = vmatpush1.msra.mxu0 0.0
        %793 = vmatprep.mubr.f32.mxu0 0.0
        %794 = vmatmul.mubr.f32.gmra.mrb[0].mxu0 %v727
        %v795 = vpop.f32.mrb[0].mxu0
        %v796 = vadd.f32 0.0, %v795
        %v797 = vpop.f32.mrb[0].mxu0
        %798 = vdwg.mxu0
        %s799 = scalar_lea.vmem %s176, 40 [#allocation2]
        %v800 = vld [vmem:[%s799] sm:$0xff]
        %v801 = vadd.f32 %v800, %v796
        %v802 = vmul.f32 %v801, 0.5
        %v803 = vtanh.pop %v802
        %v804 = vmul.f32 %v803, 0.5
        %v805 = vadd.f32 %v804, 0.5
        %v806 = vadd.f32 %v796, %v294
        %808 = vrot.lane.b32.xlu0 %v806, 64
        %v809 = vpop.permute.xlu0 %808
        %v811 = vmul.f32 %v805, %v809
        %813 = vrot.lane.b32.xlu0 %v811, 64
        %v814 = vpop.permute.xlu0 %813
        %v816 = vadd.f32 %v800, %v814
        %v817 = vtanh.pop %v816
        %v818 = vsub.f32 1.0, %v805
        %820 = vrot.lane.b32.xlu0 %v817, 96
        %v821 = vpop.permute.xlu0 %820
        %v823 = vmul.f32 %v818, %v821
        %v824 = vmul.f32 %v805, %v723
        %v825 = vadd.f32 %v823, %v824
        %827 = vrot.lane.b32.xlu0 %v825, 96
        %v828 = vpop.permute.xlu0 %827
        %v829 = vsel %vm213, %v828, 0
        %831 = vmatprep.subr.mxu0 0.0
        %832 = vmatpush1.msra.mxu0 %v203
        %833 = vmatprep.subr.mxu0 0.0
        %834 = vmatpush1.msra.mxu0 %v204
        %835 = vmatprep.subr.mxu0 0.0
        %836 = vmatpush1.msra.mxu0 %v205
        %837 = vmatprep.subr.mxu0 0.0
        %838 = vmatpush1.msra.mxu0 %v206
        %839 = vmatprep.subr.mxu0 0.0
        %840 = vmatpush1.msra.mxu0 0.0
        %841 = vmatprep.subr.mxu0 0.0
        %842 = vmatpush1.msra.mxu0 0.0
        %843 = vmatprep.subr.mxu0 0.0
        %844 = vmatpush1.msra.mxu0 0.0
        %845 = vmatprep.subr.mxu0 0.0
        %846 = vmatpush1.msra.mxu0 0.0
        %847 = vmatprep.subr.mxu0 0.0
        %848 = vmatpush1.msra.mxu0 0.0
        %849 = vmatprep.subr.mxu0 0.0
        %850 = vmatpush1.msra.mxu0 0.0
        %851 = vmatprep.subr.mxu0 0.0
        %852 = vmatpush1.msra.mxu0 0.0
        %853 = vmatprep.subr.mxu0 0.0
        %854 = vmatpush1.msra.mxu0 0.0
        %855 = vmatprep.subr.mxu0 0.0
        %856 = vmatpush1.msra.mxu0 0.0
        %857 = vmatprep.subr.mxu0 0.0
        %858 = vmatpush1.msra.mxu0 0.0
        %859 = vmatprep.subr.mxu0 0.0
        %860 = vmatpush1.msra.mxu0 0.0
        %861 = vmatprep.subr.mxu0 0.0
        %862 = vmatpush1.msra.mxu0 0.0
        %863 = vmatprep.subr.mxu0 0.0
        %864 = vmatpush1.msra.mxu0 0.0
        %865 = vmatprep.subr.mxu0 0.0
        %866 = vmatpush1.msra.mxu0 0.0
        %867 = vmatprep.subr.mxu0 0.0
        %868 = vmatpush1.msra.mxu0 0.0
        %869 = vmatprep.subr.mxu0 0.0
        %870 = vmatpush1.msra.mxu0 0.0
        %871 = vmatprep.subr.mxu0 0.0
        %872 = vmatpush1.msra.mxu0 0.0
        %873 = vmatprep.subr.mxu0 0.0
        %874 = vmatpush1.msra.mxu0 0.0
        %875 = vmatprep.subr.mxu0 0.0
        %876 = vmatpush1.msra.mxu0 0.0
        %877 = vmatprep.subr.mxu0 0.0
        %878 = vmatpush1.msra.mxu0 0.0
        %879 = vmatprep.subr.mxu0 0.0
        %880 = vmatpush1.msra.mxu0 0.0
        %881 = vmatprep.subr.mxu0 0.0
        %882 = vmatpush1.msra.mxu0 0.0
        %883 = vmatprep.subr.mxu0 0.0
        %884 = vmatpush1.msra.mxu0 0.0
        %885 = vmatprep.subr.mxu0 0.0
        %886 = vmatpush1.msra.mxu0 0.0
        %887 = vmatprep.subr.mxu0 0.0
        %888 = vmatpush1.msra.mxu0 0.0
        %889 = vmatprep.subr.mxu0 0.0
        %890 = vmatpush1.msra.mxu0 0.0
        %891 = vmatprep.subr.mxu0 0.0
        %892 = vmatpush1.msra.mxu0 0.0
        %893 = vmatprep.subr.mxu0 0.0
        %894 = vmatpush1.msra.mxu0 0.0
        %895 = vmatprep.mubr.f32.mxu0 0.0
        %896 = vmatmul.mubr.f32.gmra.mrb[0].mxu0 %v829
        %v897 = vpop.f32.mrb[0].mxu0
        %v898 = vadd.f32 0.0, %v897
        %v899 = vpop.f32.mrb[0].mxu0
        %900 = vdwg.mxu0
        %s901 = scalar_lea.vmem %s176, 48 [#allocation2]
        %v902 = vld [vmem:[%s901] sm:$0xff]
        %v903 = vadd.f32 %v902, %v898
        %v904 = vmul.f32 %v903, 0.5
        %v905 = vtanh.pop %v904
        %v906 = vmul.f32 %v905, 0.5
        %v907 = vadd.f32 %v906, 0.5
        %v908 = vadd.f32 %v898, %v294
        %910 = vrot.lane.b32.xlu0 %v908, 64
        %v911 = vpop.permute.xlu0 %910
        %v913 = vmul.f32 %v907, %v911
        %915 = vrot.lane.b32.xlu0 %v913, 64
        %v916 = vpop.permute.xlu0 %915
        %v918 = vadd.f32 %v902, %v916
        %v919 = vtanh.pop %v918
        %v920 = vsub.f32 1.0, %v907
        %922 = vrot.lane.b32.xlu0 %v919, 96
        %v923 = vpop.permute.xlu0 %922
        %v925 = vmul.f32 %v920, %v923
        %v926 = vmul.f32 %v907, %v825
        %v927 = vadd.f32 %v925, %v926
        %929 = vrot.lane.b32.xlu0 %v927, 96
        %v930 = vpop.permute.xlu0 %929
        %v931 = vsel %vm213, %v930, 0
        %933 = vmatprep.subr.mxu0 0.0
        %934 = vmatpush1.msra.mxu0 %v203
        %935 = vmatprep.subr.mxu0 0.0
        %936 = vmatpush1.msra.mxu0 %v204
        %937 = vmatprep.subr.mxu0 0.0
        %938 = vmatpush1.msra.mxu0 %v205
        %939 = vmatprep.subr.mxu0 0.0
        %940 = vmatpush1.msra.mxu0 %v206
        %941 = vmatprep.subr.mxu0 0.0
        %942 = vmatpush1.msra.mxu0 0.0
        %943 = vmatprep.subr.mxu0 0.0
        %944 = vmatpush1.msra.mxu0 0.0
        %945 = vmatprep.subr.mxu0 0.0
        %946 = vmatpush1.msra.mxu0 0.0
        %947 = vmatprep.subr.mxu0 0.0
        %948 = vmatpush1.msra.mxu0 0.0
        %949 = vmatprep.subr.mxu0 0.0
        %950 = vmatpush1.msra.mxu0 0.0
        %951 = vmatprep.subr.mxu0 0.0
        %952 = vmatpush1.msra.mxu0 0.0
        %953 = vmatprep.subr.mxu0 0.0
        %954 = vmatpush1.msra.mxu0 0.0
        %955 = vmatprep.subr.mxu0 0.0
        %956 = vmatpush1.msra.mxu0 0.0
        %957 = vmatprep.subr.mxu0 0.0
        %958 = vmatpush1.msra.mxu0 0.0
        %959 = vmatprep.subr.mxu0 0.0
        %960 = vmatpush1.msra.mxu0 0.0
        %961 = vmatprep.subr.mxu0 0.0
        %962 = vmatpush1.msra.mxu0 0.0
        %963 = vmatprep.subr.mxu0 0.0
        %964 = vmatpush1.msra.mxu0 0.0
        %965 = vmatprep.subr.mxu0 0.0
        %966 = vmatpush1.msra.mxu0 0.0
        %967 = vmatprep.subr.mxu0 0.0
        %968 = vmatpush1.msra.mxu0 0.0
        %969 = vmatprep.subr.mxu0 0.0
        %970 = vmatpush1.msra.mxu0 0.0
        %971 = vmatprep.subr.mxu0 0.0
        %972 = vmatpush1.msra.mxu0 0.0
        %973 = vmatprep.subr.mxu0 0.0
        %974 = vmatpush1.msra.mxu0 0.0
        %975 = vmatprep.subr.mxu0 0.0
        %976 = vmatpush1.msra.mxu0 0.0
        %977 = vmatprep.subr.mxu0 0.0
        %978 = vmatpush1.msra.mxu0 0.0
        %979 = vmatprep.subr.mxu0 0.0
        %980 = vmatpush1.msra.mxu0 0.0
        %981 = vmatprep.subr.mxu0 0.0
        %982 = vmatpush1.msra.mxu0 0.0
        %983 = vmatprep.subr.mxu0 0.0
        %984 = vmatpush1.msra.mxu0 0.0
        %985 = vmatprep.subr.mxu0 0.0
        %986 = vmatpush1.msra.mxu0 0.0
        %987 = vmatprep.subr.mxu0 0.0
        %988 = vmatpush1.msra.mxu0 0.0
        %989 = vmatprep.subr.mxu0 0.0
        %990 = vmatpush1.msra.mxu0 0.0
        %991 = vmatprep.subr.mxu0 0.0
        %992 = vmatpush1.msra.mxu0 0.0
        %993 = vmatprep.subr.mxu0 0.0
        %994 = vmatpush1.msra.mxu0 0.0
        %995 = vmatprep.subr.mxu0 0.0
        %996 = vmatpush1.msra.mxu0 0.0
        %997 = vmatprep.mubr.f32.mxu0 0.0
        %998 = vmatmul.mubr.f32.gmra.mrb[0].mxu0 %v931
        %v999 = vpop.f32.mrb[0].mxu0
        %v1000 = vadd.f32 0.0, %v999
        %v1001 = vpop.f32.mrb[0].mxu0
        %1002 = vdwg.mxu0
        %s1003 = scalar_lea.vmem %s176, 56 [#allocation2]
        %v1004 = vld [vmem:[%s1003] sm:$0xff]
        %v1005 = vadd.f32 %v1004, %v1000
        %v1006 = vmul.f32 %v1005, 0.5
        %v1007 = vtanh.pop %v1006
        %v1008 = vmul.f32 %v1007, 0.5
        %v1009 = vadd.f32 %v1008, 0.5
        %v1010 = vadd.f32 %v1000, %v294
        %1012 = vrot.lane.b32.xlu0 %v1010, 64
        %v1013 = vpop.permute.xlu0 %1012
        %v1015 = vmul.f32 %v1009, %v1013
        %1017 = vrot.lane.b32.xlu0 %v1015, 64
        %v1018 = vpop.permute.xlu0 %1017
        %v1020 = vadd.f32 %v1004, %v1018
        %v1021 = vtanh.pop %v1020
        %v1022 = vsub.f32 1.0, %v1009
        %1024 = vrot.lane.b32.xlu0 %v1021, 96
        %v1025 = vpop.permute.xlu0 %1024
        %v1027 = vmul.f32 %v1022, %v1025
        %v1028 = vmul.f32 %v1009, %v927
        %v1029 = vadd.f32 %v1027, %v1028
        %1031 = vrot.lane.b32.xlu0 %v1029, 96
        %v1032 = vpop.permute.xlu0 %1031
        %1034 = vst.msk [vmem:[%s202] sm:$0xff] %vm213, %v1032
        %s1035 = sand.u32 %s97, 1
        %s1036 = scalar_lea.sflag [#allocation4], %s1035
        %s1037 = sand.u32 %s97, 1
        %s1038 = smul.addr %s1037, 8
        %s1039 = scalar_lea.vmem [#allocation7], %s1038
        // Predicated region
        $region41: #{tpu_custom_call.1} parent=31 // pred_check
          %p1040 = pneg %p107
        $region42: #{tpu_custom_call.1} parent=31 // pred_check_branch
          %1042 = sbr.rel (%p1040) target = $region44
        $region43: #{tpu_custom_call.1} parent=31 // pred_region
          %s1044 = ssub.s32 128, 128
          %1045 = vsyncadd %s1036, %s1044
          %s1046 = smul.addr %s21, 128
          %s1047 = scalar_lea.hbm %s3, %s1046
          %s1049 = sshll.u32 %s1039, 4
          %s1050 = int_to_ptr.vmem [resolvable:$true] %s1049
          %1052 = dma.vmem_to_hbm [thread:$0]  %s1050, 128, %s1047, %s1036
        $region44: #{tpu_custom_call.1} parent=31 // pred_fallthru
          _
      $region32: #{tpu_custom_call.1} parent=5 // pred_fallthru
        _
      %p1053 = scmp.le.s32.totalorder 2, %s16
      // Predicated region
      $region45: #{tpu_custom_call.1} parent=5 // pred_check
        %p1054 = pneg %p1053
      $region46: #{tpu_custom_call.1} parent=5 // pred_check_branch
        %1056 = sbr.rel (%p1054) target = $region48
      $region47: #{tpu_custom_call.1} parent=5 // pred_region
        %s1057 = ssub.s32 %s16, 2
        // Predicated region
        $region49: #{tpu_custom_call.1} parent=47 // pred_check
          %p1058 = pneg %p113
        $region50: #{tpu_custom_call.1} parent=47 // pred_check_branch
          %1060 = sbr.rel (%p1058) target = $region52
        $region51: #{tpu_custom_call.1} parent=47 // pred_region
          %s1061 = sand.u32 %s98, 1
          %s1062 = scalar_lea.sflag [#allocation4], %s1061
          %s1063 = sand.u32 %s98, 1
          %s1064 = smul.addr %s1063, 8
          %s1065 = scalar_lea.vmem [#allocation7], %s1064
          %1066 = dma.done %s1062, 128
        $region52: #{tpu_custom_call.1} parent=47 // pred_fallthru
          _
      $region48: #{tpu_custom_call.1} parent=5 // pred_fallthru
        _
    $region6: #{tpu_custom_call.1} parent=1 // loop_footer
      %s20 = sadd.s32 1, %s16
    $region7: #{tpu_custom_call.1} parent=1 // loop_footer_branch
      %15 = sbr.rel target = $region3
    $region8: #{tpu_custom_call.1} parent=1 // loop_exit
      _
    %1067 = vsyncpa [#allocation3], 1
    %s1068 = scalar_lea.sflag [#allocation3], 1
    %1069 = vsyncpa %s1068, 1
    %1070 = vsyncpa [#allocation6], 1
    %1071 = vsyncpa [#allocation4], 1
    %s1072 = scalar_lea.sflag [#allocation4], 1
    %1073 = vsyncpa %s1072, 1

// kernel: tpu_custom_call.1
$region0: #{tpu_custom_call.1}
  #allocation0 [shape = 'u32[]', space=smem, size = 0x4, offset = 0x4, fixed_abs, tag = 'smem constant byte address 0x4 - core index']
  #allocation1 [shape = 'u32[144,128]{1,0:T(1,128)}', space=vmem, size = 0x12000, scoped, tag = 'internal scratch']
  %s0 = inlined_call_operand.hbm [shape: f32[8,32,96], index: 0, kind: input, shape index: {}]
  %s1 = inlined_call_operand.hbm [shape: f32[32,96], index: 1, kind: input, shape index: {}]
  %s2 = inlined_call_operand.vmem [shape: f32[1,32], index: 2, kind: input, shape index: {}]
  %s3 = inlined_call_operand.hbm [shape: f32[32,32], index: 3, kind: output, shape index: {}]
  %s4 = sld [smem:[#allocation0]]
  $region53: #{tpu_custom_call.1} parent=0
    _
  %s6 = ssub.s32 1, %s4
  %s7 = scalar_select 0, %s6, %s4
  $region1: #{tpu_custom_call.1} parent=0
    #allocation2 [shape = 'u8[65536]{0}', space=vmem, size = 0x10000, scoped, tag = 'input window, operand 0']
    #allocation3 [shape = 's32[2]{0}', space=sflag, size = 0x8, scoped, tag = 'scoped memory for tpu_custom_call.1']
    #allocation4 [shape = 's32[2]{0}', space=sflag, size = 0x8, scoped, tag = 'scoped memory for tpu_custom_call.1']
    #allocation5 [shape = 'u8[16384]{0}', space=vmem, size = 0x4000, scoped, tag = 'input window, operand 1, single buffered']
    #allocation6 [shape = 's32[1]{0}', space=sflag, size = 0x4, scoped, tag = 'scoped memory for tpu_custom_call.1']
    #allocation7 [shape = 'u8[8192]{0}', space=vmem, size = 0x2000, scoped, tag = 'output window, operand 0']
    %8 = vsyncpa [#allocation3], 0
    %s9 = scalar_lea.sflag [#allocation3], 1
    %10 = vsyncpa %s9, 0
    %11 = vsyncpa [#allocation6], 0
    %12 = vsyncpa [#allocation4], 0
    %s13 = scalar_lea.sflag [#allocation4], 1
    %14 = vsyncpa %s13, 0
    loop: start=0, step=1, limit=6
    $region2: #{tpu_custom_call.1} parent=1 // loop_pre_header
      _
    $region3: #{tpu_custom_call.1} parent=1 // loop_header
      %s16 = sphi 0, %s20
      %p17 = scmp.ge.s32.totalorder %s16, 6
      %s26 = sphi 0, %s28
      %s29 = sphi 0, %s26
      %s30 = sphi 0, %s29
      %s46 = sphi 0, %s30
      %s50 = sphi 0, %s50
      %s52 = sphi 0, %s50
      %s53 = sphi 0, %s52
      %s67 = sphi 0, %s53
      %s71 = sphi 0, %s71
      %s73 = sphi 0, %s71
      %s74 = sphi 0, %s73
      %s88 = sphi 0, %s74
      %s94 = sphi 0, %s96
      %s97 = sphi 0, %s94
      %s98 = sphi 0, %s97
      %s114 = sphi 0, %s98
    $region4: #{tpu_custom_call.1} parent=1 // loop_header_branch
      %19 = sbr.rel (%p17) target = $region8
    $region5: #{tpu_custom_call.1} parent=1 // loop_body
      %s21 = ssub.s32 %s16, 1
      %s22 = ssub.s32 %s16, 2
      %s23 = sadd.s32 %s16, 1
      %s24 = ssub.s32 %s16, %s23
      %p25 = scmp.eq.s32.totalorder %s24, 0
      %s27 = sadd.s32 %s26, 1
      %s28 = scalar_select %p25, %s26, %s27
      %p31 = pneg %p25
      %p32 = scmp.eq.s32.totalorder %s16, 3
      %p33 = por %p31, %p32
      %p34 = scmp.ne.s32.totalorder %s26, %s29
      %p35 = scmp.eq.s32.totalorder %s16, 0
      %p36 = por %p34, %p35
      %p37 = scmp.ne.s32.totalorder %s26, %s29
      %p38 = scmp.eq.s32.totalorder %s21, 3
      %p39 = por %p37, %p38
      %p40 = scmp.ne.s32.totalorder %s29, %s30
      %p41 = scmp.eq.s32.totalorder %s21, 0
      %p42 = por %p40, %p41
      %p43 = scmp.ne.s32.totalorder %s29, %s30
      %p44 = scmp.eq.s32.totalorder %s22, 3
      %p45 = por %p43, %p44
      %p47 = scmp.ne.s32.totalorder %s30, %s46
      %p48 = scmp.eq.s32.totalorder %s22, 0
      %p49 = por %p47, %p48
      %s51 = sadd.s32 %s50, 1
      %p54 = scmp.eq.s32.totalorder %s16, 3
      %p55 = scmp.ne.s32.totalorder %s50, %s52
      %p56 = scmp.eq.s32.totalorder %s16, 0
      %p57 = por %p55, %p56
      %p58 = scmp.ne.s32.totalorder %s50, %s52
      %p59 = scmp.eq.s32.totalorder %s21, 3
      %p60 = por %p58, %p59
      %p61 = scmp.ne.s32.totalorder %s52, %s53
      %p62 = scmp.eq.s32.totalorder %s21, 0
      %p63 = por %p61, %p62
      %p64 = scmp.ne.s32.totalorder %s52, %s53
      %p65 = scmp.eq.s32.totalorder %s22, 3
      %p66 = por %p64, %p65
      %p68 = scmp.ne.s32.totalorder %s53, %s67
      %p69 = scmp.eq.s32.totalorder %s22, 0
      %p70 = por %p68, %p69
      %s72 = sadd.s32 %s71, 1
      %p75 = scmp.eq.s32.totalorder %s16, 3
      %p76 = scmp.ne.s32.totalorder %s71, %s73
      %p77 = scmp.eq.s32.totalorder %s16, 0
      %p78 = por %p76, %p77
      %p79 = scmp.ne.s32.totalorder %s71, %s73
      %p80 = scmp.eq.s32.totalorder %s21, 3
      %p81 = por %p79, %p80
      %p82 = scmp.ne.s32.totalorder %s73, %s74
      %p83 = scmp.eq.s32.totalorder %s21, 0
      %p84 = por %p82, %p83
      %p85 = scmp.ne.s32.totalorder %s73, %s74
      %p86 = scmp.eq.s32.totalorder %s22, 3
      %p87 = por %p85, %p86
      %p89 = scmp.ne.s32.totalorder %s74, %s88
      %p90 = scmp.eq.s32.totalorder %s22, 0
      %p91 = por %p89, %p90
      %s92 = ssub.s32 %s16, %s23
      %p93 = scmp.eq.s32.totalorder %s92, 0
      %s95 = sadd.s32 %s94, 1
      %s96 = scalar_select %p93, %s94, %s95
      %p99 = pneg %p93
      %p100 = scmp.eq.s32.totalorder %s16, 3
      %p101 = por %p99, %p100
      %p102 = scmp.ne.s32.totalorder %s94, %s97
      %p103 = scmp.eq.s32.totalorder %s16, 0
      %p104 = por %p102, %p103
      %p105 = scmp.ne.s32.totalorder %s94, %s97
      %p106 = scmp.eq.s32.totalorder %s21, 3
      %p107 = por %p105, %p106
      %p108 = scmp.ne.s32.totalorder %s97, %s98
      %p109 = scmp.eq.s32.totalorder %s21, 0
      %p110 = por %p108, %p109
      %p111 = scmp.ne.s32.totalorder %s97, %s98
      %p112 = scmp.eq.s32.totalorder %s22, 3
      %p113 = por %p111, %p112
      %p115 = scmp.ne.s32.totalorder %s98, %s114
      %p116 = scmp.eq.s32.totalorder %s22, 0
      %p117 = por %p115, %p116
      %p118 = scmp.le.s32.totalorder 1, %s16
      %p119 = scmp.lt.s32.totalorder %s16, 5
      %p120 = pnand %p118, %p119
      %p121 = pneg %p120
      // Predicated region
      $region9: #{tpu_custom_call.1} parent=5 // pred_check
        _
      $region10: #{tpu_custom_call.1} parent=5 // pred_check_branch
        %123 = sbr.rel (%p120) target = $region12
      $region11: #{tpu_custom_call.1} parent=5 // pred_region
        %s124 = ssub.s32 %s16, 1
        // Predicated region
        $region13: #{tpu_custom_call.1} parent=11 // pred_check
          %p125 = pneg %p63
        $region14: #{tpu_custom_call.1} parent=11 // pred_check_branch
          %127 = sbr.rel (%p125) target = $region16
        $region15: #{tpu_custom_call.1} parent=11 // pred_region
          %s129 = ssub.s32 512, 512
          %130 = vsyncadd [#allocation6], %s129
          %s131 = sshll.u32 [#allocation5], 4
          %s132 = int_to_ptr.vmem [resolvable:$true] %s131
          %137 = dma.hbm_to_vmem [thread:$0]  %s1, 512, %s132, [#allocation6], 128, 128, 8
        $region16: #{tpu_custom_call.1} parent=11 // pred_fallthru
          _
        // Predicated region
        $region17: #{tpu_custom_call.1} parent=11 // pred_check
          %p138 = pneg %p84
        $region18: #{tpu_custom_call.1} parent=11 // pred_check_branch
          %140 = sbr.rel (%p138) target = $region20
        $region19: #{tpu_custom_call.1} parent=11 // pred_region
          _
        $region20: #{tpu_custom_call.1} parent=11 // pred_fallthru
          _
      $region12: #{tpu_custom_call.1} parent=5 // pred_fallthru
        _
      %p141 = scmp.lt.s32.totalorder %s16, 4
      // Predicated region
      $region21: #{tpu_custom_call.1} parent=5 // pred_check
        %p142 = pneg %p141
      $region22: #{tpu_custom_call.1} parent=5 // pred_check_branch
        %144 = sbr.rel (%p142) target = $region24
      $region23: #{tpu_custom_call.1} parent=5 // pred_region
        // Predicated region
        $region25: #{tpu_custom_call.1} parent=23 // pred_check
          %p145 = pneg %p36
        $region26: #{tpu_custom_call.1} parent=23 // pred_check_branch
          %147 = sbr.rel (%p145) target = $region28
        $region27: #{tpu_custom_call.1} parent=23 // pred_region
          %s148 = sand.u32 %s26, 1
          %s149 = scalar_lea.sflag [#allocation3], %s148
          %s150 = sand.u32 %s26, 1
          %s151 = smul.addr %s150, 64
          %s152 = scalar_lea.vmem [#allocation2], %s151
          %s154 = ssub.s32 1024, 1024
          %155 = vsyncadd %s149, %s154
          %s156 = smul.addr %s16, 128
          %s157 = scalar_lea.hbm %s0, %s156
          %s158 = sshll.u32 %s152, 4
          %s159 = int_to_ptr.vmem [resolvable:$true] %s158
          %164 = dma.hbm_to_vmem [thread:$0]  %s157, 1024, %s159, %s149, 512, 128, 8
        $region28: #{tpu_custom_call.1} parent=23 // pred_fallthru
          _
      $region24: #{tpu_custom_call.1} parent=5 // pred_fallthru
        _
      %p165 = scmp.le.s32.totalorder 1, %s16
      %p166 = scmp.lt.s32.totalorder %s16, 5
      %p167 = pnand %p165, %p166
      %p168 = pneg %p167
      // Predicated region
      $region29: #{tpu_custom_call.1} parent=5 // pred_check
        _
      $region30: #{tpu_custom_call.1} parent=5 // pred_check_branch
        %170 = sbr.rel (%p167) target = $region32
      $region31: #{tpu_custom_call.1} parent=5 // pred_region
        %s171 = ssub.s32 %s16, 1
        %s172 = sand.u32 %s29, 1
        %s173 = scalar_lea.sflag [#allocation3], %s172
        %s174 = sand.u32 %s29, 1
        %s175 = smul.addr %s174, 64
        %s176 = scalar_lea.vmem [#allocation2], %s175
        // Predicated region
        $region33: #{tpu_custom_call.1} parent=31 // pred_check
          %p177 = pneg %p42
        $region34: #{tpu_custom_call.1} parent=31 // pred_check_branch
          %179 = sbr.rel (%p177) target = $region36
        $region35: #{tpu_custom_call.1} parent=31 // pred_region
          %180 = dma.done %s173, 1024
        $region36: #{tpu_custom_call.1} parent=31 // pred_fallthru
          _
        // Predicated region
        $region37: #{tpu_custom_call.1} parent=31 // pred_check
          %p181 = pneg %p63
        $region38: #{tpu_custom_call.1} parent=31 // pred_check_branch
          %183 = sbr.rel (%p181) target = $region40
        $region39: #{tpu_custom_call.1} parent=31 // pred_region
          %184 = dma.done [#allocation6], 512
        $region40: #{tpu_custom_call.1} parent=31 // pred_fallthru
          _
        %s185 = sand.u32 %s29, 1
        %s186 = scalar_lea.sflag [#allocation3], %s185
        %s187 = sand.u32 %s29, 1
        %s188 = smul.addr %s187, 64
        %s189 = scalar_lea.vmem [#allocation2], %s188
        %p190 = pneg %p42
        %p191 = pneg %p39
        %p192 = pneg %p63
        %p193 = pneg %p60
        %p194 = pneg %p84
        %p195 = pneg %p81
        %p196 = pneg %p110
        %p197 = pneg %p107
        %s198 = sand.u32 %s97, 1
        %s199 = scalar_lea.sflag [#allocation4], %s198
        %s200 = sand.u32 %s97, 1
        %s201 = smul.addr %s200, 8
        %s202 = scalar_lea.vmem [#allocation7], %s201
        %v203 = vld [vmem:[#allocation5] sm:$0xff]
        %v204 = vld [vmem:[#allocation5 + $0x8] sm:$0xff]
        %v205 = vld [vmem:[#allocation5 + $0x10] sm:$0xff]
        %v206 = vld [vmem:[#allocation5 + $0x18] sm:$0xff]
        %v207 = vld [vmem:[%s2] sm:$0x1]
        %v209 = vlaneseq
        %v210 = vshrl.u32 %v209, 7
        %v211 = vsub.s32 0, %v210
        %v212 = vrot.slane %v207, %v211
        %vm213 = vcmask 261120
        %v215 = vsel %vm213, 0.0, 0
        %217 = vmatprep.subr.mxu0 0.0
        %218 = vmatpush1.msra.mxu0 %v203
        %219 = vmatprep.subr.mxu0 0.0
        %220 = vmatpush1.msra.mxu0 %v204
        %221 = vmatprep.subr.mxu0 0.0
        %222 = vmatpush1.msra.mxu0 %v205
        %223 = vmatprep.subr.mxu0 0.0
        %224 = vmatpush1.msra.mxu0 %v206
        %225 = vmatprep.subr.mxu0 0.0
        %226 = vmatpush1.msra.mxu0 0.0
        %227 = vmatprep.subr.mxu0 0.0
        %228 = vmatpush1.msra.mxu0 0.0
        %229 = vmatprep.subr.mxu0 0.0
        %230 = vmatpush1.msra.mxu0 0.0
        %231 = vmatprep.subr.mxu0 0.0
        %232 = vmatpush1.msra.mxu0 0.0
        %233 = vmatprep.subr.mxu0 0.0
        %234 = vmatpush1.msra.mxu0 0.0
        %235 = vmatprep.subr.mxu0 0.0
        %236 = vmatpush1.msra.mxu0 0.0
        %237 = vmatprep.subr.mxu0 0.0
        %238 = vmatpush1.msra.mxu0 0.0
        %239 = vmatprep.subr.mxu0 0.0
        %240 = vmatpush1.msra.mxu0 0.0
        %241 = vmatprep.subr.mxu0 0.0
        %242 = vmatpush1.msra.mxu0 0.0
        %243 = vmatprep.subr.mxu0 0.0
        %244 = vmatpush1.msra.mxu0 0.0
        %245 = vmatprep.subr.mxu0 0.0
        %246 = vmatpush1.msra.mxu0 0.0
        %247 = vmatprep.subr.mxu0 0.0
        %248 = vmatpush1.msra.mxu0 0.0
        %249 = vmatprep.subr.mxu0 0.0
        %250 = vmatpush1.msra.mxu0 0.0
        %251 = vmatprep.subr.mxu0 0.0
        %252 = vmatpush1.msra.mxu0 0.0
        %253 = vmatprep.subr.mxu0 0.0
        %254 = vmatpush1.msra.mxu0 0.0
        %255 = vmatprep.subr.mxu0 0.0
        %256 = vmatpush1.msra.mxu0 0.0
        %257 = vmatprep.subr.mxu0 0.0
        %258 = vmatpush1.msra.mxu0 0.0
        %259 = vmatprep.subr.mxu0 0.0
        %260 = vmatpush1.msra.mxu0 0.0
        %261 = vmatprep.subr.mxu0 0.0
        %262 = vmatpush1.msra.mxu0 0.0
        %263 = vmatprep.subr.mxu0 0.0
        %264 = vmatpush1.msra.mxu0 0.0
        %265 = vmatprep.subr.mxu0 0.0
        %266 = vmatpush1.msra.mxu0 0.0
        %267 = vmatprep.subr.mxu0 0.0
        %268 = vmatpush1.msra.mxu0 0.0
        %269 = vmatprep.subr.mxu0 0.0
        %270 = vmatpush1.msra.mxu0 0.0
        %271 = vmatprep.subr.mxu0 0.0
        %272 = vmatpush1.msra.mxu0 0.0
        %273 = vmatprep.subr.mxu0 0.0
        %274 = vmatpush1.msra.mxu0 0.0
        %275 = vmatprep.subr.mxu0 0.0
        %276 = vmatpush1.msra.mxu0 0.0
        %277 = vmatprep.subr.mxu0 0.0
        %278 = vmatpush1.msra.mxu0 0.0
        %279 = vmatprep.subr.mxu0 0.0
        %280 = vmatpush1.msra.mxu0 0.0
        %281 = vmatprep.mubr.f32.mxu0 0.0
        %282 = vmatmul.mubr.f32.gmra.mrb[0].mxu0 %v215
        %v283 = vpop.f32.mrb[0].mxu0
        %v284 = vadd.f32 0.0, %v283
        %v285 = vpop.f32.mrb[0].mxu0
        %286 = vdwg.mxu0
        %v287 = vld [vmem:[%s176] sm:$0xff]
        %v288 = vadd.f32 %v287, %v284
        %v289 = vmul.f32 %v288, 0.5
        %v290 = vtanh.pop %v289
        %v291 = vmul.f32 %v290, 0.5
        %v292 = vadd.f32 %v291, 0.5
        %293 = vrot.lane.b32.xlu0 %v212, 64
        %v294 = vpop.permute.xlu0 %293
        %v296 = vadd.f32 %v284, %v294
        %298 = vrot.lane.b32.xlu0 %v296, 64
        %v299 = vpop.permute.xlu0 %298
        %v301 = vmul.f32 %v292, %v299
        %303 = vrot.lane.b32.xlu0 %v301, 64
        %v304 = vpop.permute.xlu0 %303
        %v306 = vadd.f32 %v287, %v304
        %v307 = vtanh.pop %v306
        %v308 = vsub.f32 1.0, %v292
        %310 = vrot.lane.b32.xlu0 %v307, 96
        %v311 = vpop.permute.xlu0 %310
        %v313 = vmul.f32 %v308, %v311
        %v314 = vmul.f32 %v292, 0.0
        %v315 = vadd.f32 %v313, %v314
        %317 = vrot.lane.b32.xlu0 %v315, 96
        %v318 = vpop.permute.xlu0 %317
        %v319 = vsel %vm213, %v318, 0
        %321 = vmatprep.subr.mxu0 0.0
        %322 = vmatpush1.msra.mxu0 %v203
        %323 = vmatprep.subr.mxu0 0.0
        %324 = vmatpush1.msra.mxu0 %v204
        %325 = vmatprep.subr.mxu0 0.0
        %326 = vmatpush1.msra.mxu0 %v205
        %327 = vmatprep.subr.mxu0 0.0
        %328 = vmatpush1.msra.mxu0 %v206
        %329 = vmatprep.subr.mxu0 0.0
        %330 = vmatpush1.msra.mxu0 0.0
        %331 = vmatprep.subr.mxu0 0.0
        %332 = vmatpush1.msra.mxu0 0.0
        %333 = vmatprep.subr.mxu0 0.0
        %334 = vmatpush1.msra.mxu0 0.0
        %335 = vmatprep.subr.mxu0 0.0
        %336 = vmatpush1.msra.mxu0 0.0
        %337 = vmatprep.subr.mxu0 0.0
        %338 = vmatpush1.msra.mxu0 0.0
        %339 = vmatprep.subr.mxu0 0.0
        %340 = vmatpush1.msra.mxu0 0.0
        %341 = vmatprep.subr.mxu0 0.0
        %342 = vmatpush1.msra.mxu0 0.0
        %343 = vmatprep.subr.mxu0 0.0
        %344 = vmatpush1.msra.mxu0 0.0
        %345 = vmatprep.subr.mxu0 0.0
        %346 = vmatpush1.msra.mxu0 0.0
        %347 = vmatprep.subr.mxu0 0.0
        %348 = vmatpush1.msra.mxu0 0.0
        %349 = vmatprep.subr.mxu0 0.0
        %350 = vmatpush1.msra.mxu0 0.0
        %351 = vmatprep.subr.mxu0 0.0
        %352 = vmatpush1.msra.mxu0 0.0
        %353 = vmatprep.subr.mxu0 0.0
        %354 = vmatpush1.msra.mxu0 0.0
        %355 = vmatprep.subr.mxu0 0.0
        %356 = vmatpush1.msra.mxu0 0.0
        %357 = vmatprep.subr.mxu0 0.0
        %358 = vmatpush1.msra.mxu0 0.0
        %359 = vmatprep.subr.mxu0 0.0
        %360 = vmatpush1.msra.mxu0 0.0
        %361 = vmatprep.subr.mxu0 0.0
        %362 = vmatpush1.msra.mxu0 0.0
        %363 = vmatprep.subr.mxu0 0.0
        %364 = vmatpush1.msra.mxu0 0.0
        %365 = vmatprep.subr.mxu0 0.0
        %366 = vmatpush1.msra.mxu0 0.0
        %367 = vmatprep.subr.mxu0 0.0
        %368 = vmatpush1.msra.mxu0 0.0
        %369 = vmatprep.subr.mxu0 0.0
        %370 = vmatpush1.msra.mxu0 0.0
        %371 = vmatprep.subr.mxu0 0.0
        %372 = vmatpush1.msra.mxu0 0.0
        %373 = vmatprep.subr.mxu0 0.0
        %374 = vmatpush1.msra.mxu0 0.0
        %375 = vmatprep.subr.mxu0 0.0
        %376 = vmatpush1.msra.mxu0 0.0
        %377 = vmatprep.subr.mxu0 0.0
        %378 = vmatpush1.msra.mxu0 0.0
        %379 = vmatprep.subr.mxu0 0.0
        %380 = vmatpush1.msra.mxu0 0.0
        %381 = vmatprep.subr.mxu0 0.0
        %382 = vmatpush1.msra.mxu0 0.0
        %383 = vmatprep.subr.mxu0 0.0
        %384 = vmatpush1.msra.mxu0 0.0
        %385 = vmatprep.mubr.f32.mxu0 0.0
        %386 = vmatmul.mubr.f32.gmra.mrb[0].mxu0 %v319
        %v387 = vpop.f32.mrb[0].mxu0
        %v388 = vadd.f32 0.0, %v387
        %v389 = vpop.f32.mrb[0].mxu0
        %390 = vdwg.mxu0
        %s391 = scalar_lea.vmem %s176, 8 [#allocation2]
        %v392 = vld [vmem:[%s391] sm:$0xff]
        %v393 = vadd.f32 %v392, %v388
        %v394 = vmul.f32 %v393, 0.5
        %v395 = vtanh.pop %v394
        %v396 = vmul.f32 %v395, 0.5
        %v397 = vadd.f32 %v396, 0.5
        %v398 = vadd.f32 %v388, %v294
        %400 = vrot.lane.b32.xlu0 %v398, 64
        %v401 = vpop.permute.xlu0 %400
        %v403 = vmul.f32 %v397, %v401
        %405 = vrot.lane.b32.xlu0 %v403, 64
        %v406 = vpop.permute.xlu0 %405
        %v408 = vadd.f32 %v392, %v406
        %v409 = vtanh.pop %v408
        %v410 = vsub.f32 1.0, %v397
        %412 = vrot.lane.b32.xlu0 %v409, 96
        %v413 = vpop.permute.xlu0 %412
        %v415 = vmul.f32 %v410, %v413
        %v416 = vmul.f32 %v397, %v315
        %v417 = vadd.f32 %v415, %v416
        %419 = vrot.lane.b32.xlu0 %v417, 96
        %v420 = vpop.permute.xlu0 %419
        %v421 = vsel %vm213, %v420, 0
        %423 = vmatprep.subr.mxu0 0.0
        %424 = vmatpush1.msra.mxu0 %v203
        %425 = vmatprep.subr.mxu0 0.0
        %426 = vmatpush1.msra.mxu0 %v204
        %427 = vmatprep.subr.mxu0 0.0
        %428 = vmatpush1.msra.mxu0 %v205
        %429 = vmatprep.subr.mxu0 0.0
        %430 = vmatpush1.msra.mxu0 %v206
        %431 = vmatprep.subr.mxu0 0.0
        %432 = vmatpush1.msra.mxu0 0.0
        %433 = vmatprep.subr.mxu0 0.0
        %434 = vmatpush1.msra.mxu0 0.0
        %435 = vmatprep.subr.mxu0 0.0
        %436 = vmatpush1.msra.mxu0 0.0
        %437 = vmatprep.subr.mxu0 0.0
        %438 = vmatpush1.msra.mxu0 0.0
        %439 = vmatprep.subr.mxu0 0.0
        %440 = vmatpush1.msra.mxu0 0.0
        %441 = vmatprep.subr.mxu0 0.0
        %442 = vmatpush1.msra.mxu0 0.0
        %443 = vmatprep.subr.mxu0 0.0
        %444 = vmatpush1.msra.mxu0 0.0
        %445 = vmatprep.subr.mxu0 0.0
        %446 = vmatpush1.msra.mxu0 0.0
        %447 = vmatprep.subr.mxu0 0.0
        %448 = vmatpush1.msra.mxu0 0.0
        %449 = vmatprep.subr.mxu0 0.0
        %450 = vmatpush1.msra.mxu0 0.0
        %451 = vmatprep.subr.mxu0 0.0
        %452 = vmatpush1.msra.mxu0 0.0
        %453 = vmatprep.subr.mxu0 0.0
        %454 = vmatpush1.msra.mxu0 0.0
        %455 = vmatprep.subr.mxu0 0.0
        %456 = vmatpush1.msra.mxu0 0.0
        %457 = vmatprep.subr.mxu0 0.0
        %458 = vmatpush1.msra.mxu0 0.0
        %459 = vmatprep.subr.mxu0 0.0
        %460 = vmatpush1.msra.mxu0 0.0
        %461 = vmatprep.subr.mxu0 0.0
        %462 = vmatpush1.msra.mxu0 0.0
        %463 = vmatprep.subr.mxu0 0.0
        %464 = vmatpush1.msra.mxu0 0.0
        %465 = vmatprep.subr.mxu0 0.0
        %466 = vmatpush1.msra.mxu0 0.0
        %467 = vmatprep.subr.mxu0 0.0
        %468 = vmatpush1.msra.mxu0 0.0
        %469 = vmatprep.subr.mxu0 0.0
        %470 = vmatpush1.msra.mxu0 0.0
        %471 = vmatprep.subr.mxu0 0.0
        %472 = vmatpush1.msra.mxu0 0.0
        %473 = vmatprep.subr.mxu0 0.0
        %474 = vmatpush1.msra.mxu0 0.0
        %475 = vmatprep.subr.mxu0 0.0
        %476 = vmatpush1.msra.mxu0 0.0
        %477 = vmatprep.subr.mxu0 0.0
        %478 = vmatpush1.msra.mxu0 0.0
        %479 = vmatprep.subr.mxu0 0.0
        %480 = vmatpush1.msra.mxu0 0.0
        %481 = vmatprep.subr.mxu0 0.0
        %482 = vmatpush1.msra.mxu0 0.0
        %483 = vmatprep.subr.mxu0 0.0
        %484 = vmatpush1.msra.mxu0 0.0
        %485 = vmatprep.subr.mxu0 0.0
        %486 = vmatpush1.msra.mxu0 0.0
        %487 = vmatprep.mubr.f32.mxu0 0.0
        %488 = vmatmul.mubr.f32.gmra.mrb[0].mxu0 %v421
        %v489 = vpop.f32.mrb[0].mxu0
        %v490 = vadd.f32 0.0, %v489
        %v491 = vpop.f32.mrb[0].mxu0
        %492 = vdwg.mxu0
        %s493 = scalar_lea.vmem %s176, 16 [#allocation2]
        %v494 = vld [vmem:[%s493] sm:$0xff]
        %v495 = vadd.f32 %v494, %v490
        %v496 = vmul.f32 %v495, 0.5
        %v497 = vtanh.pop %v496
        %v498 = vmul.f32 %v497, 0.5
        %v499 = vadd.f32 %v498, 0.5
        %v500 = vadd.f32 %v490, %v294
        %502 = vrot.lane.b32.xlu0 %v500, 64
        %v503 = vpop.permute.xlu0 %502
        %v505 = vmul.f32 %v499, %v503
        %507 = vrot.lane.b32.xlu0 %v505, 64
        %v508 = vpop.permute.xlu0 %507
        %v510 = vadd.f32 %v494, %v508
        %v511 = vtanh.pop %v510
        %v512 = vsub.f32 1.0, %v499
        %514 = vrot.lane.b32.xlu0 %v511, 96
        %v515 = vpop.permute.xlu0 %514
        %v517 = vmul.f32 %v512, %v515
        %v518 = vmul.f32 %v499, %v417
        %v519 = vadd.f32 %v517, %v518
        %521 = vrot.lane.b32.xlu0 %v519, 96
        %v522 = vpop.permute.xlu0 %521
        %v523 = vsel %vm213, %v522, 0
        %525 = vmatprep.subr.mxu0 0.0
        %526 = vmatpush1.msra.mxu0 %v203
        %527 = vmatprep.subr.mxu0 0.0
        %528 = vmatpush1.msra.mxu0 %v204
        %529 = vmatprep.subr.mxu0 0.0
        %530 = vmatpush1.msra.mxu0 %v205
        %531 = vmatprep.subr.mxu0 0.0
        %532 = vmatpush1.msra.mxu0 %v206
        %533 = vmatprep.subr.mxu0 0.0
        %534 = vmatpush1.msra.mxu0 0.0
        %535 = vmatprep.subr.mxu0 0.0
        %536 = vmatpush1.msra.mxu0 0.0
        %537 = vmatprep.subr.mxu0 0.0
        %538 = vmatpush1.msra.mxu0 0.0
        %539 = vmatprep.subr.mxu0 0.0
        %540 = vmatpush1.msra.mxu0 0.0
        %541 = vmatprep.subr.mxu0 0.0
        %542 = vmatpush1.msra.mxu0 0.0
        %543 = vmatprep.subr.mxu0 0.0
        %544 = vmatpush1.msra.mxu0 0.0
        %545 = vmatprep.subr.mxu0 0.0
        %546 = vmatpush1.msra.mxu0 0.0
        %547 = vmatprep.subr.mxu0 0.0
        %548 = vmatpush1.msra.mxu0 0.0
        %549 = vmatprep.subr.mxu0 0.0
        %550 = vmatpush1.msra.mxu0 0.0
        %551 = vmatprep.subr.mxu0 0.0
        %552 = vmatpush1.msra.mxu0 0.0
        %553 = vmatprep.subr.mxu0 0.0
        %554 = vmatpush1.msra.mxu0 0.0
        %555 = vmatprep.subr.mxu0 0.0
        %556 = vmatpush1.msra.mxu0 0.0
        %557 = vmatprep.subr.mxu0 0.0
        %558 = vmatpush1.msra.mxu0 0.0
        %559 = vmatprep.subr.mxu0 0.0
        %560 = vmatpush1.msra.mxu0 0.0
        %561 = vmatprep.subr.mxu0 0.0
        %562 = vmatpush1.msra.mxu0 0.0
        %563 = vmatprep.subr.mxu0 0.0
        %564 = vmatpush1.msra.mxu0 0.0
        %565 = vmatprep.subr.mxu0 0.0
        %566 = vmatpush1.msra.mxu0 0.0
        %567 = vmatprep.subr.mxu0 0.0
        %568 = vmatpush1.msra.mxu0 0.0
        %569 = vmatprep.subr.mxu0 0.0
        %570 = vmatpush1.msra.mxu0 0.0
        %571 = vmatprep.subr.mxu0 0.0
        %572 = vmatpush1.msra.mxu0 0.0
        %573 = vmatprep.subr.mxu0 0.0
        %574 = vmatpush1.msra.mxu0 0.0
        %575 = vmatprep.subr.mxu0 0.0
        %576 = vmatpush1.msra.mxu0 0.0
        %577 = vmatprep.subr.mxu0 0.0
        %578 = vmatpush1.msra.mxu0 0.0
        %579 = vmatprep.subr.mxu0 0.0
        %580 = vmatpush1.msra.mxu0 0.0
        %581 = vmatprep.subr.mxu0 0.0
        %582 = vmatpush1.msra.mxu0 0.0
        %583 = vmatprep.subr.mxu0 0.0
        %584 = vmatpush1.msra.mxu0 0.0
        %585 = vmatprep.subr.mxu0 0.0
        %586 = vmatpush1.msra.mxu0 0.0
        %587 = vmatprep.subr.mxu0 0.0
        %588 = vmatpush1.msra.mxu0 0.0
        %589 = vmatprep.mubr.f32.mxu0 0.0
        %590 = vmatmul.mubr.f32.gmra.mrb[0].mxu0 %v523
        %v591 = vpop.f32.mrb[0].mxu0
        %v592 = vadd.f32 0.0, %v591
        %v593 = vpop.f32.mrb[0].mxu0
        %594 = vdwg.mxu0
        %s595 = scalar_lea.vmem %s176, 24 [#allocation2]
        %v596 = vld [vmem:[%s595] sm:$0xff]
        %v597 = vadd.f32 %v596, %v592
        %v598 = vmul.f32 %v597, 0.5
        %v599 = vtanh.pop %v598
        %v600 = vmul.f32 %v599, 0.5
        %v601 = vadd.f32 %v600, 0.5
        %v602 = vadd.f32 %v592, %v294
        %604 = vrot.lane.b32.xlu0 %v602, 64
        %v605 = vpop.permute.xlu0 %604
        %v607 = vmul.f32 %v601, %v605
        %609 = vrot.lane.b32.xlu0 %v607, 64
        %v610 = vpop.permute.xlu0 %609
        %v612 = vadd.f32 %v596, %v610
        %v613 = vtanh.pop %v612
        %v614 = vsub.f32 1.0, %v601
        %616 = vrot.lane.b32.xlu0 %v613, 96
        %v617 = vpop.permute.xlu0 %616
        %v619 = vmul.f32 %v614, %v617
        %v620 = vmul.f32 %v601, %v519
        %v621 = vadd.f32 %v619, %v620
        %623 = vrot.lane.b32.xlu0 %v621, 96
        %v624 = vpop.permute.xlu0 %623
        %v625 = vsel %vm213, %v624, 0
        %627 = vmatprep.subr.mxu0 0.0
        %628 = vmatpush1.msra.mxu0 %v203
        %629 = vmatprep.subr.mxu0 0.0
        %630 = vmatpush1.msra.mxu0 %v204
        %631 = vmatprep.subr.mxu0 0.0
        %632 = vmatpush1.msra.mxu0 %v205
        %633 = vmatprep.subr.mxu0 0.0
        %634 = vmatpush1.msra.mxu0 %v206
        %635 = vmatprep.subr.mxu0 0.0
        %636 = vmatpush1.msra.mxu0 0.0
        %637 = vmatprep.subr.mxu0 0.0
        %638 = vmatpush1.msra.mxu0 0.0
        %639 = vmatprep.subr.mxu0 0.0
        %640 = vmatpush1.msra.mxu0 0.0
        %641 = vmatprep.subr.mxu0 0.0
        %642 = vmatpush1.msra.mxu0 0.0
        %643 = vmatprep.subr.mxu0 0.0
        %644 = vmatpush1.msra.mxu0 0.0
        %645 = vmatprep.subr.mxu0 0.0
        %646 = vmatpush1.msra.mxu0 0.0
        %647 = vmatprep.subr.mxu0 0.0
        %648 = vmatpush1.msra.mxu0 0.0
        %649 = vmatprep.subr.mxu0 0.0
        %650 = vmatpush1.msra.mxu0 0.0
        %651 = vmatprep.subr.mxu0 0.0
        %652 = vmatpush1.msra.mxu0 0.0
        %653 = vmatprep.subr.mxu0 0.0
        %654 = vmatpush1.msra.mxu0 0.0
        %655 = vmatprep.subr.mxu0 0.0
        %656 = vmatpush1.msra.mxu0 0.0
        %657 = vmatprep.subr.mxu0 0.0
        %658 = vmatpush1.msra.mxu0 0.0
        %659 = vmatprep.subr.mxu0 0.0
        %660 = vmatpush1.msra.mxu0 0.0
        %661 = vmatprep.subr.mxu0 0.0
        %662 = vmatpush1.msra.mxu0 0.0
        %663 = vmatprep.subr.mxu0 0.0
        %664 = vmatpush1.msra.mxu0 0.0
        %665 = vmatprep.subr.mxu0 0.0
        %666 = vmatpush1.msra.mxu0 0.0
        %667 = vmatprep.subr.mxu0 0.0
        %668 = vmatpush1.msra.mxu0 0.0
        %669 = vmatprep.subr.mxu0 0.0
        %670 = vmatpush1.msra.mxu0 0.0
        %671 = vmatprep.subr.mxu0 0.0
        %672 = vmatpush1.msra.mxu0 0.0
        %673 = vmatprep.subr.mxu0 0.0
        %674 = vmatpush1.msra.mxu0 0.0
        %675 = vmatprep.subr.mxu0 0.0
        %676 = vmatpush1.msra.mxu0 0.0
        %677 = vmatprep.subr.mxu0 0.0
        %678 = vmatpush1.msra.mxu0 0.0
        %679 = vmatprep.subr.mxu0 0.0
        %680 = vmatpush1.msra.mxu0 0.0
        %681 = vmatprep.subr.mxu0 0.0
        %682 = vmatpush1.msra.mxu0 0.0
        %683 = vmatprep.subr.mxu0 0.0
        %684 = vmatpush1.msra.mxu0 0.0
        %685 = vmatprep.subr.mxu0 0.0
        %686 = vmatpush1.msra.mxu0 0.0
        %687 = vmatprep.subr.mxu0 0.0
        %688 = vmatpush1.msra.mxu0 0.0
        %689 = vmatprep.subr.mxu0 0.0
        %690 = vmatpush1.msra.mxu0 0.0
        %691 = vmatprep.mubr.f32.mxu0 0.0
        %692 = vmatmul.mubr.f32.gmra.mrb[0].mxu0 %v625
        %v693 = vpop.f32.mrb[0].mxu0
        %v694 = vadd.f32 0.0, %v693
        %v695 = vpop.f32.mrb[0].mxu0
        %696 = vdwg.mxu0
        %s697 = scalar_lea.vmem %s176, 32 [#allocation2]
        %v698 = vld [vmem:[%s697] sm:$0xff]
        %v699 = vadd.f32 %v698, %v694
        %v700 = vmul.f32 %v699, 0.5
        %v701 = vtanh.pop %v700
        %v702 = vmul.f32 %v701, 0.5
        %v703 = vadd.f32 %v702, 0.5
        %v704 = vadd.f32 %v694, %v294
        %706 = vrot.lane.b32.xlu0 %v704, 64
        %v707 = vpop.permute.xlu0 %706
        %v709 = vmul.f32 %v703, %v707
        %711 = vrot.lane.b32.xlu0 %v709, 64
        %v712 = vpop.permute.xlu0 %711
        %v714 = vadd.f32 %v698, %v712
        %v715 = vtanh.pop %v714
        %v716 = vsub.f32 1.0, %v703
        %718 = vrot.lane.b32.xlu0 %v715, 96
        %v719 = vpop.permute.xlu0 %718
        %v721 = vmul.f32 %v716, %v719
        %v722 = vmul.f32 %v703, %v621
        %v723 = vadd.f32 %v721, %v722
        %725 = vrot.lane.b32.xlu0 %v723, 96
        %v726 = vpop.permute.xlu0 %725
        %v727 = vsel %vm213, %v726, 0
        %729 = vmatprep.subr.mxu0 0.0
        %730 = vmatpush1.msra.mxu0 %v203
        %731 = vmatprep.subr.mxu0 0.0
        %732 = vmatpush1.msra.mxu0 %v204
        %733 = vmatprep.subr.mxu0 0.0
        %734 = vmatpush1.msra.mxu0 %v205
        %735 = vmatprep.subr.mxu0 0.0
        %736 = vmatpush1.msra.mxu0 %v206
        %737 = vmatprep.subr.mxu0 0.0
        %738 = vmatpush1.msra.mxu0 0.0
        %739 = vmatprep.subr.mxu0 0.0
        %740 = vmatpush1.msra.mxu0 0.0
        %741 = vmatprep.subr.mxu0 0.0
        %742 = vmatpush1.msra.mxu0 0.0
        %743 = vmatprep.subr.mxu0 0.0
        %744 = vmatpush1.msra.mxu0 0.0
        %745 = vmatprep.subr.mxu0 0.0
        %746 = vmatpush1.msra.mxu0 0.0
        %747 = vmatprep.subr.mxu0 0.0
        %748 = vmatpush1.msra.mxu0 0.0
        %749 = vmatprep.subr.mxu0 0.0
        %750 = vmatpush1.msra.mxu0 0.0
        %751 = vmatprep.subr.mxu0 0.0
        %752 = vmatpush1.msra.mxu0 0.0
        %753 = vmatprep.subr.mxu0 0.0
        %754 = vmatpush1.msra.mxu0 0.0
        %755 = vmatprep.subr.mxu0 0.0
        %756 = vmatpush1.msra.mxu0 0.0
        %757 = vmatprep.subr.mxu0 0.0
        %758 = vmatpush1.msra.mxu0 0.0
        %759 = vmatprep.subr.mxu0 0.0
        %760 = vmatpush1.msra.mxu0 0.0
        %761 = vmatprep.subr.mxu0 0.0
        %762 = vmatpush1.msra.mxu0 0.0
        %763 = vmatprep.subr.mxu0 0.0
        %764 = vmatpush1.msra.mxu0 0.0
        %765 = vmatprep.subr.mxu0 0.0
        %766 = vmatpush1.msra.mxu0 0.0
        %767 = vmatprep.subr.mxu0 0.0
        %768 = vmatpush1.msra.mxu0 0.0
        %769 = vmatprep.subr.mxu0 0.0
        %770 = vmatpush1.msra.mxu0 0.0
        %771 = vmatprep.subr.mxu0 0.0
        %772 = vmatpush1.msra.mxu0 0.0
        %773 = vmatprep.subr.mxu0 0.0
        %774 = vmatpush1.msra.mxu0 0.0
        %775 = vmatprep.subr.mxu0 0.0
        %776 = vmatpush1.msra.mxu0 0.0
        %777 = vmatprep.subr.mxu0 0.0
        %778 = vmatpush1.msra.mxu0 0.0
        %779 = vmatprep.subr.mxu0 0.0
        %780 = vmatpush1.msra.mxu0 0.0
        %781 = vmatprep.subr.mxu0 0.0
        %782 = vmatpush1.msra.mxu0 0.0
        %783 = vmatprep.subr.mxu0 0.0
        %784 = vmatpush1.msra.mxu0 0.0
        %785 = vmatprep.subr.mxu0 0.0
        %786 = vmatpush1.msra.mxu0 0.0
        %787 = vmatprep.subr.mxu0 0.0
        %788 = vmatpush1.msra.mxu0 0.0
        %789 = vmatprep.subr.mxu0 0.0
        %790 = vmatpush1.msra.mxu0 0.0
        %791 = vmatprep.subr.mxu0 0.0
        %792 = vmatpush1.msra.mxu0 0.0
        %793 = vmatprep.mubr.f32.mxu0 0.0
        %794 = vmatmul.mubr.f32.gmra.mrb[0].mxu0 %v727
        %v795 = vpop.f32.mrb[0].mxu0
        %v796 = vadd.f32 0.0, %v795
        %v797 = vpop.f32.mrb[0].mxu0
        %798 = vdwg.mxu0
        %s799 = scalar_lea.vmem %s176, 40 [#allocation2]
        %v800 = vld [vmem:[%s799] sm:$0xff]
        %v801 = vadd.f32 %v800, %v796
        %v802 = vmul.f32 %v801, 0.5
        %v803 = vtanh.pop %v802
        %v804 = vmul.f32 %v803, 0.5
        %v805 = vadd.f32 %v804, 0.5
        %v806 = vadd.f32 %v796, %v294
        %808 = vrot.lane.b32.xlu0 %v806, 64
        %v809 = vpop.permute.xlu0 %808
        %v811 = vmul.f32 %v805, %v809
        %813 = vrot.lane.b32.xlu0 %v811, 64
        %v814 = vpop.permute.xlu0 %813
        %v816 = vadd.f32 %v800, %v814
        %v817 = vtanh.pop %v816
        %v818 = vsub.f32 1.0, %v805
        %820 = vrot.lane.b32.xlu0 %v817, 96
        %v821 = vpop.permute.xlu0 %820
        %v823 = vmul.f32 %v818, %v821
        %v824 = vmul.f32 %v805, %v723
        %v825 = vadd.f32 %v823, %v824
        %827 = vrot.lane.b32.xlu0 %v825, 96
        %v828 = vpop.permute.xlu0 %827
        %v829 = vsel %vm213, %v828, 0
        %831 = vmatprep.subr.mxu0 0.0
        %832 = vmatpush1.msra.mxu0 %v203
        %833 = vmatprep.subr.mxu0 0.0
        %834 = vmatpush1.msra.mxu0 %v204
        %835 = vmatprep.subr.mxu0 0.0
        %836 = vmatpush1.msra.mxu0 %v205
        %837 = vmatprep.subr.mxu0 0.0
        %838 = vmatpush1.msra.mxu0 %v206
        %839 = vmatprep.subr.mxu0 0.0
        %840 = vmatpush1.msra.mxu0 0.0
        %841 = vmatprep.subr.mxu0 0.0
        %842 = vmatpush1.msra.mxu0 0.0
        %843 = vmatprep.subr.mxu0 0.0
        %844 = vmatpush1.msra.mxu0 0.0
        %845 = vmatprep.subr.mxu0 0.0
        %846 = vmatpush1.msra.mxu0 0.0
        %847 = vmatprep.subr.mxu0 0.0
        %848 = vmatpush1.msra.mxu0 0.0
        %849 = vmatprep.subr.mxu0 0.0
        %850 = vmatpush1.msra.mxu0 0.0
        %851 = vmatprep.subr.mxu0 0.0
        %852 = vmatpush1.msra.mxu0 0.0
        %853 = vmatprep.subr.mxu0 0.0
        %854 = vmatpush1.msra.mxu0 0.0
        %855 = vmatprep.subr.mxu0 0.0
        %856 = vmatpush1.msra.mxu0 0.0
        %857 = vmatprep.subr.mxu0 0.0
        %858 = vmatpush1.msra.mxu0 0.0
        %859 = vmatprep.subr.mxu0 0.0
        %860 = vmatpush1.msra.mxu0 0.0
        %861 = vmatprep.subr.mxu0 0.0
        %862 = vmatpush1.msra.mxu0 0.0
        %863 = vmatprep.subr.mxu0 0.0
        %864 = vmatpush1.msra.mxu0 0.0
        %865 = vmatprep.subr.mxu0 0.0
        %866 = vmatpush1.msra.mxu0 0.0
        %867 = vmatprep.subr.mxu0 0.0
        %868 = vmatpush1.msra.mxu0 0.0
        %869 = vmatprep.subr.mxu0 0.0
        %870 = vmatpush1.msra.mxu0 0.0
        %871 = vmatprep.subr.mxu0 0.0
        %872 = vmatpush1.msra.mxu0 0.0
        %873 = vmatprep.subr.mxu0 0.0
        %874 = vmatpush1.msra.mxu0 0.0
        %875 = vmatprep.subr.mxu0 0.0
        %876 = vmatpush1.msra.mxu0 0.0
        %877 = vmatprep.subr.mxu0 0.0
        %878 = vmatpush1.msra.mxu0 0.0
        %879 = vmatprep.subr.mxu0 0.0
        %880 = vmatpush1.msra.mxu0 0.0
        %881 = vmatprep.subr.mxu0 0.0
        %882 = vmatpush1.msra.mxu0 0.0
        %883 = vmatprep.subr.mxu0 0.0
        %884 = vmatpush1.msra.mxu0 0.0
        %885 = vmatprep.subr.mxu0 0.0
        %886 = vmatpush1.msra.mxu0 0.0
        %887 = vmatprep.subr.mxu0 0.0
        %888 = vmatpush1.msra.mxu0 0.0
        %889 = vmatprep.subr.mxu0 0.0
        %890 = vmatpush1.msra.mxu0 0.0
        %891 = vmatprep.subr.mxu0 0.0
        %892 = vmatpush1.msra.mxu0 0.0
        %893 = vmatprep.subr.mxu0 0.0
        %894 = vmatpush1.msra.mxu0 0.0
        %895 = vmatprep.mubr.f32.mxu0 0.0
        %896 = vmatmul.mubr.f32.gmra.mrb[0].mxu0 %v829
        %v897 = vpop.f32.mrb[0].mxu0
        %v898 = vadd.f32 0.0, %v897
        %v899 = vpop.f32.mrb[0].mxu0
        %900 = vdwg.mxu0
        %s901 = scalar_lea.vmem %s176, 48 [#allocation2]
        %v902 = vld [vmem:[%s901] sm:$0xff]
        %v903 = vadd.f32 %v902, %v898
        %v904 = vmul.f32 %v903, 0.5
        %v905 = vtanh.pop %v904
        %v906 = vmul.f32 %v905, 0.5
        %v907 = vadd.f32 %v906, 0.5
        %v908 = vadd.f32 %v898, %v294
        %910 = vrot.lane.b32.xlu0 %v908, 64
        %v911 = vpop.permute.xlu0 %910
        %v913 = vmul.f32 %v907, %v911
        %915 = vrot.lane.b32.xlu0 %v913, 64
        %v916 = vpop.permute.xlu0 %915
        %v918 = vadd.f32 %v902, %v916
        %v919 = vtanh.pop %v918
        %v920 = vsub.f32 1.0, %v907
        %922 = vrot.lane.b32.xlu0 %v919, 96
        %v923 = vpop.permute.xlu0 %922
        %v925 = vmul.f32 %v920, %v923
        %v926 = vmul.f32 %v907, %v825
        %v927 = vadd.f32 %v925, %v926
        %929 = vrot.lane.b32.xlu0 %v927, 96
        %v930 = vpop.permute.xlu0 %929
        %v931 = vsel %vm213, %v930, 0
        %933 = vmatprep.subr.mxu0 0.0
        %934 = vmatpush1.msra.mxu0 %v203
        %935 = vmatprep.subr.mxu0 0.0
        %936 = vmatpush1.msra.mxu0 %v204
        %937 = vmatprep.subr.mxu0 0.0
        %938 = vmatpush1.msra.mxu0 %v205
        %939 = vmatprep.subr.mxu0 0.0
        %940 = vmatpush1.msra.mxu0 %v206
        %941 = vmatprep.subr.mxu0 0.0
        %942 = vmatpush1.msra.mxu0 0.0
        %943 = vmatprep.subr.mxu0 0.0
        %944 = vmatpush1.msra.mxu0 0.0
        %945 = vmatprep.subr.mxu0 0.0
        %946 = vmatpush1.msra.mxu0 0.0
        %947 = vmatprep.subr.mxu0 0.0
        %948 = vmatpush1.msra.mxu0 0.0
        %949 = vmatprep.subr.mxu0 0.0
        %950 = vmatpush1.msra.mxu0 0.0
        %951 = vmatprep.subr.mxu0 0.0
        %952 = vmatpush1.msra.mxu0 0.0
        %953 = vmatprep.subr.mxu0 0.0
        %954 = vmatpush1.msra.mxu0 0.0
        %955 = vmatprep.subr.mxu0 0.0
        %956 = vmatpush1.msra.mxu0 0.0
        %957 = vmatprep.subr.mxu0 0.0
        %958 = vmatpush1.msra.mxu0 0.0
        %959 = vmatprep.subr.mxu0 0.0
        %960 = vmatpush1.msra.mxu0 0.0
        %961 = vmatprep.subr.mxu0 0.0
        %962 = vmatpush1.msra.mxu0 0.0
        %963 = vmatprep.subr.mxu0 0.0
        %964 = vmatpush1.msra.mxu0 0.0
        %965 = vmatprep.subr.mxu0 0.0
        %966 = vmatpush1.msra.mxu0 0.0
        %967 = vmatprep.subr.mxu0 0.0
        %968 = vmatpush1.msra.mxu0 0.0
        %969 = vmatprep.subr.mxu0 0.0
        %970 = vmatpush1.msra.mxu0 0.0
        %971 = vmatprep.subr.mxu0 0.0
        %972 = vmatpush1.msra.mxu0 0.0
        %973 = vmatprep.subr.mxu0 0.0
        %974 = vmatpush1.msra.mxu0 0.0
        %975 = vmatprep.subr.mxu0 0.0
        %976 = vmatpush1.msra.mxu0 0.0
        %977 = vmatprep.subr.mxu0 0.0
        %978 = vmatpush1.msra.mxu0 0.0
        %979 = vmatprep.subr.mxu0 0.0
        %980 = vmatpush1.msra.mxu0 0.0
        %981 = vmatprep.subr.mxu0 0.0
        %982 = vmatpush1.msra.mxu0 0.0
        %983 = vmatprep.subr.mxu0 0.0
        %984 = vmatpush1.msra.mxu0 0.0
        %985 = vmatprep.subr.mxu0 0.0
        %986 = vmatpush1.msra.mxu0 0.0
        %987 = vmatprep.subr.mxu0 0.0
        %988 = vmatpush1.msra.mxu0 0.0
        %989 = vmatprep.subr.mxu0 0.0
        %990 = vmatpush1.msra.mxu0 0.0
        %991 = vmatprep.subr.mxu0 0.0
        %992 = vmatpush1.msra.mxu0 0.0
        %993 = vmatprep.subr.mxu0 0.0
        %994 = vmatpush1.msra.mxu0 0.0
        %995 = vmatprep.subr.mxu0 0.0
        %996 = vmatpush1.msra.mxu0 0.0
        %997 = vmatprep.mubr.f32.mxu0 0.0
        %998 = vmatmul.mubr.f32.gmra.mrb[0].mxu0 %v931
        %v999 = vpop.f32.mrb[0].mxu0
        %v1000 = vadd.f32 0.0, %v999
        %v1001 = vpop.f32.mrb[0].mxu0
        %1002 = vdwg.mxu0
        %s1003 = scalar_lea.vmem %s176, 56 [#allocation2]
        %v1004 = vld [vmem:[%s1003] sm:$0xff]
        %v1005 = vadd.f32 %v1004, %v1000
        %v1006 = vmul.f32 %v1005, 0.5
        %v1007 = vtanh.pop %v1006
        %v1008 = vmul.f32 %v1007, 0.5
        %v1009 = vadd.f32 %v1008, 0.5
        %v1010 = vadd.f32 %v1000, %v294
        %1012 = vrot.lane.b32.xlu0 %v1010, 64
        %v1013 = vpop.permute.xlu0 %1012
        %v1015 = vmul.f32 %v1009, %v1013
        %1017 = vrot.lane.b32.xlu0 %v1015, 64
        %v1018 = vpop.permute.xlu0 %1017
        %v1020 = vadd.f32 %v1004, %v1018
        %v1021 = vtanh.pop %v1020
        %v1022 = vsub.f32 1.0, %v1009
        %1024 = vrot.lane.b32.xlu0 %v1021, 96
        %v1025 = vpop.permute.xlu0 %1024
        %v1027 = vmul.f32 %v1022, %v1025
        %v1028 = vmul.f32 %v1009, %v927
        %v1029 = vadd.f32 %v1027, %v1028
        %1031 = vrot.lane.b32.xlu0 %v1029, 96
        %v1032 = vpop.permute.xlu0 %1031
        %1034 = vst.msk [vmem:[%s202] sm:$0xff] %vm213, %v1032
        %s1035 = sand.u32 %s97, 1
        %s1036 = scalar_lea.sflag [#allocation4], %s1035
        %s1037 = sand.u32 %s97, 1
        %s1038 = smul.addr %s1037, 8
        %s1039 = scalar_lea.vmem [#allocation7], %s1038
        // Predicated region
        $region41: #{tpu_custom_call.1} parent=31 // pred_check
          %p1040 = pneg %p107
        $region42: #{tpu_custom_call.1} parent=31 // pred_check_branch
          %1042 = sbr.rel (%p1040) target = $region44
        $region43: #{tpu_custom_call.1} parent=31 // pred_region
          %s1044 = ssub.s32 128, 128
          %1045 = vsyncadd %s1036, %s1044
          %s1046 = smul.addr %s21, 128
          %s1047 = scalar_lea.hbm %s3, %s1046
          %s1049 = sshll.u32 %s1039, 4
          %s1050 = int_to_ptr.vmem [resolvable:$true] %s1049
          %1052 = dma.vmem_to_hbm [thread:$0]  %s1050, 128, %s1047, %s1036
        $region44: #{tpu_custom_call.1} parent=31 // pred_fallthru
          _
      $region32: #{tpu_custom_call.1} parent=5 // pred_fallthru
        _
      %p1053 = scmp.le.s32.totalorder 2, %s16
      // Predicated region
      $region45: #{tpu_custom_call.1} parent=5 // pred_check
        %p1054 = pneg %p1053
      $region46: #{tpu_custom_call.1} parent=5 // pred_check_branch
        %1056 = sbr.rel (%p1054) target = $region48
      $region47: #{tpu_custom_call.1} parent=5 // pred_region
        %s1057 = ssub.s32 %s16, 2
        // Predicated region
        $region49: #{tpu_custom_call.1} parent=47 // pred_check
          %p1058 = pneg %p113
        $region50: #{tpu_custom_call.1} parent=47 // pred_check_branch
          %1060 = sbr.rel (%p1058) target = $region52
        $region51: #{tpu_custom_call.1} parent=47 // pred_region
          %s1061 = sand.u32 %s98, 1
          %s1062 = scalar_lea.sflag [#allocation4], %s1061
          %s1063 = sand.u32 %s98, 1
          %s1064 = smul.addr %s1063, 8
          %s1065 = scalar_lea.vmem [#allocation7], %s1064
          %1066 = dma.done %s1062, 128
        $region52: #{tpu_custom_call.1} parent=47 // pred_fallthru
          _
      $region48: #{tpu_custom_call.1} parent=5 // pred_fallthru
        _
    $region6: #{tpu_custom_call.1} parent=1 // loop_footer
      %s20 = sadd.s32 1, %s16
    $region7: #{tpu_custom_call.1} parent=1 // loop_footer_branch
      %15 = sbr.rel target = $region3
    $region8: #{tpu_custom_call.1} parent=1 // loop_exit
      _
    %1067 = vsyncpa [#allocation3], 1
    %s1068 = scalar_lea.sflag [#allocation3], 1
    %1069 = vsyncpa %s1068, 1
    %1070 = vsyncpa [#allocation6], 1
    %1071 = vsyncpa [#allocation4], 1
    %s1072 = scalar_lea.sflag [#allocation4], 1
    %1073 = vsyncpa %s1072, 1

</llo_original>
